<compile_context>
chip_gen: v6e
topology: v6e:2x2x1
jax: 0.10.0
libtpu: 0.0.40
codegen_flags: <defaults>
</compile_context>

<pallas_src>
import functools

import jax
import jax.numpy as jnp
from jax.experimental import pallas as pl
from jax.experimental.pallas import tpu as pltpu

# ----- model config (matches GNNStack.__init__ defaults) -----
INPUT_DIM = 4
GCN_CHANNELS = [32, 32, 32, 1]
NUM_LAYERS = len(GCN_CHANNELS)
FEAT_CAT = sum(GCN_CHANNELS)          # 97 = concat of tanh'd GCN outputs
SORT_K = 30                           # SortAggregation(k=30)
CONV5_OUT = 16                        # Conv1d(1, 16, k=97, stride=97)
CONV6_OUT = 32                        # Conv1d(16, 32, 5, 1)
CONV6_K = 5
POOL_T = SORT_K // 2                  # 15 after MaxPool1d(2, 2)
CONV6_T = POOL_T - CONV6_K + 1        # 11
HIDDEN = 128                          # Linear(352, 128)
NUM_CLASSES = 2
CP = 128                              # padded channel width for GCN features
_MIB = 1024 * 1024

# (column offset, width) of each GCN layer in the concatenated feature slab.
_LAYER_SLOTS = []
_off = 0
for _c in GCN_CHANNELS:
    _LAYER_SLOTS.append((_off, _c))
    _off += _c


def _round_up(x, m):
    return (x + m - 1) // m * m


# --------------------------- per-generation GCN plan ---------------------------
def _gcn_plan(n_pad):
    """Pick (tm, a_resident, vmem_limit) from the TPU generation + VMEM budget."""
    try:
        kind = jax.devices()[0].device_kind.lower()
    except Exception:
        kind = ""
    if "v7" in kind:
        vmem_limit, tall_mxu = 46 * _MIB, True     # 64 MiB physical: leave headroom
    elif "v6" in kind:
        vmem_limit, tall_mxu = 100 * _MIB, True    # 128 MiB physical
    elif "v5 lite" in kind or "v5e" in kind or "v5lite" in kind:
        vmem_limit, tall_mxu = 100 * _MIB, False   # 128 MiB physical, 128-tall MXU
    else:
        vmem_limit, tall_mxu = 64 * _MIB, False    # unknown: conservative defaults

    def usage(tm, resident):
        a_bytes = 2 * (n_pad if resident else tm) * n_pad * 2   # bf16, 2 buffers
        fixed = (2 * n_pad * CP * 2                 # resident X (bf16)
                 + 2 * NUM_LAYERS * CP * CP * 2     # resident W stack (bf16)
                 + 2 * n_pad * CP * 4               # resident f32 feature output
                 + 2 * n_pad * CP * 2               # XW ping-pong scratch (bf16)
                 + 4 * _MIB)                        # epilogue values + internals
        return a_bytes + fixed

    a_resident = usage(128, True) <= vmem_limit
    tm = 128                                        # v5e: always 128 (4x128 MXU)
    if tall_mxu and n_pad % 256 == 0 and usage(256, a_resident) <= vmem_limit:
        tm = 256                                    # feed v6e/v7x 256-tall MXU
    return tm, a_resident, vmem_limit


# --------------------------- fused GCN stack kernel ---------------------------
def _make_gcn_kernel(tm, num_layers, a_resident):
    def kernel(a_ref, x_ref, w_ref, b_ref, feat_ref, xw_ref):
        l = pl.program_id(0)                    # GCN layer (sequential)
        r = pl.program_id(1)                    # node-row tile
        row0 = pl.multiple_of(r * tm, tm)

        # Very first grid step: XW for layer 0 over all rows (one tiny matmul).
        @pl.when(jnp.logical_and(l == 0, r == 0))
        def _():
            xw_ref[0] = jnp.dot(
                x_ref[...], w_ref[0],
                preferred_element_type=jnp.float32).astype(jnp.bfloat16)

        # Resident A: DMA'd once, revisited across all 4 layers; slice rows here.
        a_tile = a_ref[pl.ds(row0, tm), :] if a_resident else a_ref[...]

        # GCNConv l for this row tile: A_norm[rows] @ (H_{l-1} @ W_l) + b_l, tanh.
        agg = jnp.dot(a_tile, xw_ref[l % 2], preferred_element_type=jnp.float32)
        act = jnp.tanh(agg + b_ref[...])        # (tm, CP) f32; 0 outside layer slot

        # W_l / b_l were column-shifted on the host, so layer l's real outputs
        # already sit at its slot of the concatenated 97(->128)-lane slab and
        # every other lane of `act` is exactly 0.  The concat therefore becomes
        # one full-128-lane dense store per tile (plain store at l==0 also
        # zero-inits the padded lanes; exact add-merge afterwards) -- no masked
        # narrow stores, no separate zeros_like init.
        @pl.when(l == 0)
        def _():
            feat_ref[pl.ds(row0, tm), :] = act

        @pl.when(l > 0)
        def _():
            feat_ref[pl.ds(row0, tm), :] = feat_ref[pl.ds(row0, tm), :] + act

        # Incrementally produce next layer's XW for this row tile (ping-pong
        # buffer): removes the per-layer serial "H @ W" start-up matmul and the
        # separate activation scratch.
        @pl.when(l < num_layers - 1)
        def _():
            nxt = jnp.dot(act.astype(jnp.bfloat16), w_ref[l + 1],
                          preferred_element_type=jnp.float32).astype(jnp.bfloat16)

            @pl.when(l % 2 == 0)
            def _():
                xw_ref[1, pl.ds(row0, tm), :] = nxt

            @pl.when(l % 2 == 1)
            def _():
                xw_ref[0, pl.ds(row0, tm), :] = nxt

    return kernel


def gcn_fused_forward(a_pad, x_pad, w_stack, b_stack):
    n_pad = a_pad.shape[0]
    num_layers = w_stack.shape[0]
    tm, a_resident, vmem_limit = _gcn_plan(n_pad)
    num_row_tiles = n_pad // tm

    if a_resident:
        # Constant index map => A is DMA'd once and revisited across all layers.
        a_spec = pl.BlockSpec((n_pad, n_pad), lambda l, r: (0, 0))
    else:
        # Fallback for very large graphs: stream A in row tiles (once per layer).
        # TODO(synk): int8 (v5e/v6e) / fp8 (v7x) quantized A would halve this
        #             stream again; needs a numerics check first.
        a_spec = pl.BlockSpec((tm, n_pad), lambda l, r: (r, 0))

    return pl.pallas_call(
        _make_gcn_kernel(tm, num_layers, a_resident),
        out_shape=jax.ShapeDtypeStruct((n_pad, CP), jnp.float32),
        grid=(num_layers, num_row_tiles),
        in_specs=[
            a_spec,                                                     # A_norm
            pl.BlockSpec((n_pad, CP), lambda l, r: (0, 0)),             # X (resident)
            pl.BlockSpec((num_layers, CP, CP), lambda l, r: (0, 0, 0)), # W stack (resident)
            pl.BlockSpec((None, 1, CP), lambda l, r: (l, 0, 0)),        # b_l
        ],
        out_specs=pl.BlockSpec((n_pad, CP), lambda l, r: (0, 0)),       # resident feat slab
        scratch_shapes=[
            pltpu.VMEM((2, n_pad, CP), jnp.bfloat16),   # XW ping-pong across layers
        ],
        # TODO(synk): using v7x's 2nd TensorCore needs the XW scratch exchanged
        #             between cores (VMEM_SHARED / HBM round-trip + barrier), so
        #             the row axis stays "arbitrary" here.
        compiler_params=pltpu.CompilerParams(
            dimension_semantics=("arbitrary", "arbitrary"),
            vmem_limit_bytes=vmem_limit),
    )(a_pad, x_pad, w_stack, b_stack)


# --------------------------- batched CNN / MLP head kernel ---------------------------
def _make_head_kernel(batch):
    n6 = batch * CONV6_T      # valid conv6 rows; time-major row index = t*batch + b

    def kernel(xe_ref, xo_ref, w5_ref, b5_ref, w6_ref, b6_ref,
               w1_ref, b1_ref, w2_ref, b2_ref, feat_ref, logp_ref):
        w5 = w5_ref[...]
        b5 = b5_ref[...]
        # conv5 (kernel=stride=97) == one matmul per sorted node over the whole
        # batch; the even/odd split folds relu(conv5) + MaxPool1d(2,2) into a max.
        ye = jnp.maximum(
            jnp.dot(xe_ref[...], w5, preferred_element_type=jnp.float32) + b5, 0.0)
        yo = jnp.maximum(
            jnp.dot(xo_ref[...], w5, preferred_element_type=jnp.float32) + b5, 0.0)
        y_pool = jnp.maximum(ye, yo)            # (batch*15 (+pad), 16), row = t*B + b

        # conv6 (k=5, stride=1): time-major rows make the im2col windows plain
        # contiguous row slices and every produced row is a valid output.
        win = jnp.concatenate(
            [y_pool[k * batch:k * batch + n6, :] for k in range(CONV6_K)],
            axis=1).astype(jnp.bfloat16)                            # (batch*11, 80)
        y6 = jnp.maximum(
            jnp.dot(win, w6_ref[...], preferred_element_type=jnp.float32)
            + b6_ref[...], 0.0)                                     # (batch*11, 32)

        # classifier_1 runs on exactly `batch` rows: graph b's (t, out_ch) flatten
        # is the lane-concat of 11 contiguous row groups (w1 pre-permuted on host).
        flat = jnp.concatenate(
            [y6[t * batch:(t + 1) * batch, :] for t in range(CONV6_T)],
            axis=1).astype(jnp.bfloat16)                            # (batch, 352)
        h = jnp.maximum(
            jnp.dot(flat, w1_ref[...], preferred_element_type=jnp.float32)
            + b1_ref[...], 0.0)                                     # (batch, 128)
        # TODO(synk): Dropout(0.5) is eval-mode identity here (no RNG-dependent mask).

        # classifier_2 + log_softmax; padded class lanes carry a -1e30 bias so the
        # 128-lane softmax equals the softmax over the 2 real classes.
        logits = jnp.dot(h.astype(jnp.bfloat16), w2_ref[...],
                         preferred_element_type=jnp.float32) + b2_ref[...]
        m = jnp.max(logits, axis=-1, keepdims=True)
        lse = jnp.log(jnp.sum(jnp.exp(logits - m), axis=-1, keepdims=True))

        feat_ref[...] = h                        # one full-block store per output
        logp_ref[...] = logits - m - lse

    return kernel


def head_forward(batch, xe, xo, w5p, b5, w6im, b6, w1r, b1, w2p, b2p):
    vmem = pl.BlockSpec(memory_space=pltpu.MemorySpace.VMEM)
    return pl.pallas_call(
        _make_head_kernel(batch),
        out_shape=(jax.ShapeDtypeStruct((batch, HIDDEN), jnp.float32),
                   jax.ShapeDtypeStruct((batch, HIDDEN), jnp.float32)),
        in_specs=[vmem] * 10,
        out_specs=(vmem, vmem),
    )(xe, xo, w5p, b5, w6im, b6, w1r, b1, w2p, b2p)


# --------------------------- glue (plain JAX) ---------------------------
def normalized_adj(edge_index, n):
    # GCNConv normalization: D^{-1/2} (A + I) D^{-1/2}
    a = jnp.zeros((n, n), jnp.float32).at[edge_index[0], edge_index[1]].set(1.0)
    a = a + jnp.eye(n, dtype=jnp.float32)
    dinv = jax.lax.rsqrt(a.sum(axis=1))
    return a * dinv[:, None] * dinv[None, :]


def ring_edges(num_graphs, nodes_per_graph):
    src, dst = [], []
    for g in range(num_graphs):
        off = g * nodes_per_graph
        for i in range(nodes_per_graph):
            j = (i + 1) % nodes_per_graph
            src += [off + i, off + j]
            dst += [off + j, off + i]
    return jnp.array([src, dst], dtype=jnp.int32)


def init_params(key):
    keys = jax.random.split(key, 16)
    dims = [INPUT_DIM] + GCN_CHANNELS
    ki = 0

    # GCN weights/biases: real blocks placed at column-shifted positions so each
    # layer's outputs land directly in its slot of the concatenated feature slab
    # (and the next layer's weight rows line up with the previous layer's slot).
    w_stack = jnp.zeros((NUM_LAYERS, CP, CP), jnp.float32)
    b_stack = jnp.zeros((NUM_LAYERS, 1, CP), jnp.float32)
    in_off = 0
    for i in range(NUM_LAYERS):
        out_off = _LAYER_SLOTS[i][0]
        w = jax.random.normal(keys[ki], (dims[i], dims[i + 1]), jnp.float32) * 0.2; ki += 1
        b = jax.random.normal(keys[ki], (dims[i + 1],), jnp.float32) * 0.1; ki += 1
        w_stack = w_stack.at[i, in_off:in_off + dims[i],
                             out_off:out_off + dims[i + 1]].set(w)
        b_stack = b_stack.at[i, 0, out_off:out_off + dims[i + 1]].set(b)
        in_off = out_off

    # Head params drawn in PyTorch layouts, rearranged + cast to bf16 operands.
    w5 = jax.random.normal(keys[ki], (CONV5_OUT, 1, FEAT_CAT), jnp.float32) * 0.1; ki += 1
    b5 = jax.random.normal(keys[ki], (CONV5_OUT,), jnp.float32) * 0.1; ki += 1
    w6 = jax.random.normal(keys[ki], (CONV6_OUT, CONV5_OUT, CONV6_K), jnp.float32) * 0.1; ki += 1
    b6 = jax.random.normal(keys[ki], (CONV6_OUT,), jnp.float32) * 0.1; ki += 1
    w1 = jax.random.normal(keys[ki], (HIDDEN, CONV6_OUT * CONV6_T), jnp.float32) * 0.05; ki += 1
    b1 = jax.random.normal(keys[ki], (HIDDEN,), jnp.float32) * 0.05; ki += 1
    w2 = jax.random.normal(keys[ki], (NUM_CLASSES, HIDDEN), jnp.float32) * 0.05; ki += 1
    b2 = jax.random.normal(keys[ki], (NUM_CLASSES,), jnp.float32) * 0.05; ki += 1

    head = (
        # conv5: (out, 1, 97) -> (128, 16), channel rows zero-padded.
        jnp.zeros((CP, CONV5_OUT), jnp.float32).at[:FEAT_CAT, :].set(
            jnp.transpose(w5[:, 0, :])).astype(jnp.bfloat16),
        b5.reshape(1, CONV5_OUT),
        # conv6: (out, in, k) -> im2col (k*in, out), lane order k-major, in-minor.
        jnp.transpose(w6, (2, 1, 0)).reshape(
            CONV6_K * CONV5_OUT, CONV6_OUT).astype(jnp.bfloat16),
        b6.reshape(1, CONV6_OUT),
        # classifier_1: PyTorch flatten is (out_ch, t); kernel flatten is (t, out_ch).
        jnp.transpose(w1.T.reshape(CONV6_OUT, CONV6_T, HIDDEN), (1, 0, 2)).reshape(
            CONV6_T * CONV6_OUT, HIDDEN).astype(jnp.bfloat16),
        b1.reshape(1, HIDDEN),
        # classifier_2 padded to 128 class lanes; padded logits carry a -1e30 bias.
        jnp.zeros((HIDDEN, HIDDEN), jnp.float32).at[:, :NUM_CLASSES].set(
            w2.T).astype(jnp.bfloat16),
        jnp.full((1, HIDDEN), -1e30, jnp.float32).at[0, :NUM_CLASSES].set(b2),
    )
    return {"gcn_w": w_stack.astype(jnp.bfloat16), "gcn_b": b_stack, "head": head}


@functools.partial(jax.jit, static_argnums=(2, 3))
def gnn_stack_forward(x, edge_index, batch_size, nodes_per_graph, params):
    n = x.shape[0]
    n_pad = _round_up(n, 128)

    # GCNConv normalization; padded operands are built directly in bf16 (no
    # padded f32 intermediate) to halve the XLA-side adjacency HBM traffic.
    a = normalized_adj(edge_index, n)
    a_pad = jnp.zeros((n_pad, n_pad), jnp.bfloat16).at[:n, :n].set(
        a.astype(jnp.bfloat16))
    x_pad = jnp.zeros((n_pad, CP), jnp.bfloat16).at[:n, :x.shape[1]].set(
        x.astype(jnp.bfloat16))

    feats = gcn_fused_forward(a_pad, x_pad, params["gcn_w"], params["gcn_b"])[:n]

    # SortAggregation(k=30): per-graph sort by the last real feature channel
    # (descending), keep top-k nodes.
    # TODO(synk): data-dependent argsort + gather stay in XLA (no clean in-kernel
    #             sort); assumes nodes_per_graph >= SORT_K (DGCNN zero-pads
    #             shorter graphs).
    xg = feats.reshape(batch_size, nodes_per_graph, CP)
    order = jnp.argsort(-xg[:, :, FEAT_CAT - 1], axis=1)[:, :SORT_K]
    xs = jnp.take_along_axis(xg, order[:, :, None], axis=1)          # (B, 30, 128)

    # Even/odd split folds relu(conv5)+MaxPool1d(2,2) in-kernel.  Rows are laid
    # out time-major (row = t*B + b) so the conv6 im2col windows and the
    # classifier flatten become contiguous row slices over exactly B rows.
    xe = jnp.transpose(xs[:, 0::2, :], (1, 0, 2)).reshape(batch_size * POOL_T, CP)
    xo = jnp.transpose(xs[:, 1::2, :], (1, 0, 2)).reshape(batch_size * POOL_T, CP)
    pad_rows = _round_up(batch_size * POOL_T, 8) - batch_size * POOL_T
    if pad_rows:
        xe = jnp.pad(xe, ((0, pad_rows), (0, 0)))
        xo = jnp.pad(xo, ((0, pad_rows), (0, 0)))
    xe = xe.astype(jnp.bfloat16)
    xo = xo.astype(jnp.bfloat16)

    feat, logp = head_forward(batch_size, xe, xo, *params["head"])
    return feat, logp[:, :NUM_CLASSES]


if __name__ == "__main__":
    key = jax.random.PRNGKey(0)
    kx, kp = jax.random.split(key)
    B, NODES_PER_GRAPH = 2, 32
    N = B * NODES_PER_GRAPH

    x = jax.random.normal(kx, (N, INPUT_DIM), jnp.float32)
    edge_index = ring_edges(B, NODES_PER_GRAPH)
    params = init_params(kp)

    out, log_probs = gnn_stack_forward(x, edge_index, B, NODES_PER_GRAPH, params)
    jax.block_until_ready((out, log_probs))
    assert out.shape == (B, HIDDEN)
    assert log_probs.shape == (B, NUM_CLASSES)
    print("KERNEL_OK")
</pallas_src>

<mosaic_0001>
module attributes {stable_mosaic.version = 11 : i64} {
  func.func @kernel(%arg0: i32, %arg1: i32, %arg2: memref<128x128xbf16, #tpu.memory_space<vmem>>, %arg3: memref<128x128xbf16, #tpu.memory_space<vmem>>, %arg4: memref<4x128x128xbf16, #tpu.memory_space<vmem>>, %arg5: memref<1x1x128xf32, #tpu.memory_space<vmem>>, %arg6: memref<128x128xf32, #tpu.memory_space<vmem>>, %arg7: memref<2x128x128xbf16, #tpu.memory_space<vmem>>) attributes {dimension_semantics = [#tpu.dimension_semantics<arbitrary>, #tpu.dimension_semantics<arbitrary>], iteration_bounds = array<i64: 4, 1>, scalar_prefetch = 0 : i64, scratch_operands = 1 : i64, tpu.core_type = #tpu.core_type<tc>, window_params = [{pipeline_mode = #tpu.pipeline_mode<synchronous>, transform_indices = @transform_0, window_bounds = array<i64: 128, 128>}, {pipeline_mode = #tpu.pipeline_mode<synchronous>, transform_indices = @transform_1, window_bounds = array<i64: 128, 128>}, {pipeline_mode = #tpu.pipeline_mode<synchronous>, transform_indices = @transform_2, window_bounds = array<i64: 4, 128, 128>}, {transform_indices = @transform_3, window_bounds = array<i64: 1, 1, 128>}, {pipeline_mode = #tpu.pipeline_mode<synchronous>, transform_indices = @transform_4, window_bounds = array<i64: 128, 128>}]} {
    %c128_i32 = arith.constant 128 : i32
    %0 = arith.muli %arg1, %c128_i32 : i32
    %1 = tpu.assume_multiple %0, 128 : i32
    %c0_i32 = arith.constant 0 : i32
    %2 = arith.cmpi eq, %arg0, %c0_i32 : i32
    %c0_i32_0 = arith.constant 0 : i32
    %3 = arith.cmpi eq, %arg1, %c0_i32_0 : i32
    %4 = arith.andi %2, %3 : i1
    %5 = arith.extui %4 : i1 to i32
    %c0_i32_1 = arith.constant 0 : i32
    %6 = arith.cmpi ne, %5, %c0_i32_1 : i32
    scf.if %6 {
      %c0_16 = arith.constant 0 : index
      %c0_17 = arith.constant 0 : index
      %37 = vector.load %arg3[%c0_16, %c0_17] : memref<128x128xbf16, #tpu.memory_space<vmem>>, vector<128x128xbf16>
      %c0_18 = arith.constant 0 : index
      %c0_19 = arith.constant 0 : index
      %c0_20 = arith.constant 0 : index
      %38 = vector.load %arg4[%c0_18, %c0_19, %c0_20] : memref<4x128x128xbf16, #tpu.memory_space<vmem>>, vector<1x128x128xbf16>
      %39 = vector.shape_cast %38 : vector<1x128x128xbf16> to vector<128x128xbf16>
      %cst_21 = arith.constant dense<0.000000e+00> : vector<128x128xf32>
      %40 = tpu.matmul %37, %39, %cst_21 {dimension_numbers = #tpu.dot_dimension_numbers<[1], [0], [0], [1], [0, 0, 1, 1], [], []>} : vector<128x128xbf16>, vector<128x128xbf16>, vector<128x128xf32> -> vector<128x128xf32>
      %41 = arith.truncf %40 : vector<128x128xf32> to vector<128x128xbf16>
      %c0_22 = arith.constant 0 : index
      %c0_23 = arith.constant 0 : index
      %c0_24 = arith.constant 0 : index
      %42 = vector.load %arg7[%c0_22, %c0_23, %c0_24] : memref<2x128x128xbf16, #tpu.memory_space<vmem>>, vector<1x128x128xbf16>
      %43 = vector.shape_cast %42 : vector<1x128x128xbf16> to vector<128x128xbf16>
      %44 = vector.shape_cast %41 : vector<128x128xbf16> to vector<1x128x128xbf16>
      tpu.vector_store %arg7[%c0_22, %c0_23, %c0_24], %44 {strides = array<i32>} : memref<2x128x128xbf16, #tpu.memory_space<vmem>>, vector<1x128x128xbf16>,
    } else {
    }
    %7 = arith.index_cast %1 : i32 to index
    %c0 = arith.constant 0 : index
    %8 = vector.load %arg2[%7, %c0] : memref<128x128xbf16, #tpu.memory_space<vmem>>, vector<128x128xbf16>
    %c2_i32 = arith.constant 2 : i32
    %c0_i32_2 = arith.constant 0 : i32
    %9 = arith.cmpi eq, %c2_i32, %c0_i32_2 : i32
    %c1_i32 = arith.constant 1 : i32
    %10 = arith.select %9, %c1_i32, %c2_i32 : i32
    %11 = arith.remsi %arg0, %10 : i32
    %c0_i32_3 = arith.constant 0 : i32
    %12 = arith.cmpi ne, %11, %c0_i32_3 : i32
    %c0_i32_4 = arith.constant 0 : i32
    %13 = arith.cmpi slt, %11, %c0_i32_4 : i32
    %c0_i32_5 = arith.constant 0 : i32
    %14 = arith.cmpi slt, %10, %c0_i32_5 : i32
    %15 = arith.xori %13, %14 : i1
    %16 = arith.andi %15, %12 : i1
    %17 = arith.addi %11, %10 : i32
    %18 = arith.select %16, %17, %11 : i32
    %19 = arith.index_cast %18 : i32 to index
    %c0_6 = arith.constant 0 : index
    %c0_7 = arith.constant 0 : index
    %20 = vector.load %arg7[%19, %c0_6, %c0_7] : memref<2x128x128xbf16, #tpu.memory_space<vmem>>, vector<1x128x128xbf16>
    %21 = vector.shape_cast %20 : vector<1x128x128xbf16> to vector<128x128xbf16>
    %cst = arith.constant dense<0.000000e+00> : vector<128x128xf32>
    %22 = tpu.matmul %8, %21, %cst {dimension_numbers = #tpu.dot_dimension_numbers<[1], [0], [0], [1], [0, 0, 1, 1], [], []>} : vector<128x128xbf16>, vector<128x128xbf16>, vector<128x128xf32> -> vector<128x128xf32>
    %c0_8 = arith.constant 0 : index
    %c0_9 = arith.constant 0 : index
    %c0_10 = arith.constant 0 : index
    %23 = vector.load %arg5[%c0_8, %c0_9, %c0_10] : memref<1x1x128xf32, #tpu.memory_space<vmem>>, vector<1x1x128xf32>
    %24 = vector.shape_cast %23 : vector<1x1x128xf32> to vector<1x128xf32>
    %25 = vector.broadcast %24 : vector<1x128xf32> to vector<128x128xf32>
    %26 = arith.addf %22, %25 : vector<128x128xf32>
    %27 = math.tanh %26 : vector<128x128xf32>
    %c0_i32_11 = arith.constant 0 : i32
    %28 = arith.cmpi eq, %arg0, %c0_i32_11 : i32
    %29 = arith.extui %28 : i1 to i32
    %c0_i32_12 = arith.constant 0 : i32
    %30 = arith.cmpi ne, %29, %c0_i32_12 : i32
    scf.if %30 {
      %37 = arith.index_cast %1 : i32 to index
      %c0_16 = arith.constant 0 : index
      %38 = vector.load %arg6[%37, %c0_16] : memref<128x128xf32, #tpu.memory_space<vmem>>, vector<128x128xf32>
      tpu.vector_store %arg6[%37, %c0_16], %27 {strides = array<i32>} : memref<128x128xf32, #tpu.memory_space<vmem>>, vector<128x128xf32>,
    } else {
    }
    %c0_i32_13 = arith.constant 0 : i32
    %31 = arith.cmpi sgt, %arg0, %c0_i32_13 : i32
    %32 = arith.extui %31 : i1 to i32
    %c0_i32_14 = arith.constant 0 : i32
    %33 = arith.cmpi ne, %32, %c0_i32_14 : i32
    scf.if %33 {
      %37 = arith.index_cast %1 : i32 to index
      %c0_16 = arith.constant 0 : index
      %38 = vector.load %arg6[%37, %c0_16] : memref<128x128xf32, #tpu.memory_space<vmem>>, vector<128x128xf32>
      %39 = arith.addf %38, %27 : vector<128x128xf32>
      %40 = arith.index_cast %1 : i32 to index
      %c0_17 = arith.constant 0 : index
      %41 = vector.load %arg6[%40, %c0_17] : memref<128x128xf32, #tpu.memory_space<vmem>>, vector<128x128xf32>
      tpu.vector_store %arg6[%40, %c0_17], %39 {strides = array<i32>} : memref<128x128xf32, #tpu.memory_space<vmem>>, vector<128x128xf32>,
    } else {
    }
    %c3_i32 = arith.constant 3 : i32
    %34 = arith.cmpi slt, %arg0, %c3_i32 : i32
    %35 = arith.extui %34 : i1 to i32
    %c0_i32_15 = arith.constant 0 : i32
    %36 = arith.cmpi ne, %35, %c0_i32_15 : i32
    scf.if %36 {
      %37 = arith.truncf %27 : vector<128x128xf32> to vector<128x128xbf16>
      %c1_i32_16 = arith.constant 1 : i32
      %38 = arith.addi %arg0, %c1_i32_16 : i32
      %39 = arith.index_cast %38 : i32 to index
      %c0_17 = arith.constant 0 : index
      %c0_18 = arith.constant 0 : index
      %40 = vector.load %arg4[%39, %c0_17, %c0_18] : memref<4x128x128xbf16, #tpu.memory_space<vmem>>, vector<1x128x128xbf16>
      %41 = vector.shape_cast %40 : vector<1x128x128xbf16> to vector<128x128xbf16>
      %cst_19 = arith.constant dense<0.000000e+00> : vector<128x128xf32>
      %42 = tpu.matmul %37, %41, %cst_19 {dimension_numbers = #tpu.dot_dimension_numbers<[1], [0], [0], [1], [0, 0, 1, 1], [], []>} : vector<128x128xbf16>, vector<128x128xbf16>, vector<128x128xf32> -> vector<128x128xf32>
      %43 = arith.truncf %42 : vector<128x128xf32> to vector<128x128xbf16>
      %c2_i32_20 = arith.constant 2 : i32
      %c0_i32_21 = arith.constant 0 : i32
      %44 = arith.cmpi eq, %c2_i32_20, %c0_i32_21 : i32
      %c1_i32_22 = arith.constant 1 : i32
      %45 = arith.select %44, %c1_i32_22, %c2_i32_20 : i32
      %46 = arith.remsi %arg0, %45 : i32
      %c0_i32_23 = arith.constant 0 : i32
      %47 = arith.cmpi ne, %46, %c0_i32_23 : i32
      %c0_i32_24 = arith.constant 0 : i32
      %48 = arith.cmpi slt, %46, %c0_i32_24 : i32
      %c0_i32_25 = arith.constant 0 : i32
      %49 = arith.cmpi slt, %45, %c0_i32_25 : i32
      %50 = arith.xori %48, %49 : i1
      %51 = arith.andi %50, %47 : i1
      %52 = arith.addi %46, %45 : i32
      %53 = arith.select %51, %52, %46 : i32
      %c0_i32_26 = arith.constant 0 : i32
      %54 = arith.cmpi eq, %53, %c0_i32_26 : i32
      %55 = arith.extui %54 : i1 to i32
      %c0_i32_27 = arith.constant 0 : i32
      %56 = arith.cmpi ne, %55, %c0_i32_27 : i32
      scf.if %56 {
        %c1 = arith.constant 1 : index
        %70 = arith.index_cast %1 : i32 to index
        %c0_36 = arith.constant 0 : index
        %71 = vector.load %arg7[%c1, %70, %c0_36] : memref<2x128x128xbf16, #tpu.memory_space<vmem>>, vector<1x128x128xbf16>
        %72 = vector.shape_cast %71 : vector<1x128x128xbf16> to vector<128x128xbf16>
        %73 = vector.shape_cast %43 : vector<128x128xbf16> to vector<1x128x128xbf16>
        tpu.vector_store %arg7[%c1, %70, %c0_36], %73 {strides = array<i32>} : memref<2x128x128xbf16, #tpu.memory_space<vmem>>, vector<1x128x128xbf16>,
      } else {
      }
      %c2_i32_28 = arith.constant 2 : i32
      %c0_i32_29 = arith.constant 0 : i32
      %57 = arith.cmpi eq, %c2_i32_28, %c0_i32_29 : i32
      %c1_i32_30 = arith.constant 1 : i32
      %58 = arith.select %57, %c1_i32_30, %c2_i32_28 : i32
      %59 = arith.remsi %arg0, %58 : i32
      %c0_i32_31 = arith.constant 0 : i32
      %60 = arith.cmpi ne, %59, %c0_i32_31 : i32
      %c0_i32_32 = arith.constant 0 : i32
      %61 = arith.cmpi slt, %59, %c0_i32_32 : i32
      %c0_i32_33 = arith.constant 0 : i32
      %62 = arith.cmpi slt, %58, %c0_i32_33 : i32
      %63 = arith.xori %61, %62 : i1
      %64 = arith.andi %63, %60 : i1
      %65 = arith.addi %59, %58 : i32
      %66 = arith.select %64, %65, %59 : i32
      %c1_i32_34 = arith.constant 1 : i32
      %67 = arith.cmpi eq, %66, %c1_i32_34 : i32
      %68 = arith.extui %67 : i1 to i32
      %c0_i32_35 = arith.constant 0 : i32
      %69 = arith.cmpi ne, %68, %c0_i32_35 : i32
      scf.if %69 {
        %c0_36 = arith.constant 0 : index
        %70 = arith.index_cast %1 : i32 to index
        %c0_37 = arith.constant 0 : index
        %71 = vector.load %arg7[%c0_36, %70, %c0_37] : memref<2x128x128xbf16, #tpu.memory_space<vmem>>, vector<1x128x128xbf16>
        %72 = vector.shape_cast %71 : vector<1x128x128xbf16> to vector<128x128xbf16>
        %73 = vector.shape_cast %43 : vector<128x128xbf16> to vector<1x128x128xbf16>
        tpu.vector_store %arg7[%c0_36, %70, %c0_37], %73 {strides = array<i32>} : memref<2x128x128xbf16, #tpu.memory_space<vmem>>, vector<1x128x128xbf16>,
      } else {
      }
    } else {
    }
    return
  }
  func.func @transform_0(%arg0: i32, %arg1: i32) -> (i32, i32) {
    %c0_i32 = arith.constant 0 : i32
    %c0_i32_0 = arith.constant 0 : i32
    %c0_i32_1 = arith.constant 0 : i32
    return %c0_i32, %c0_i32_0 : i32, i32
  }
  func.func @transform_1(%arg0: i32, %arg1: i32) -> (i32, i32) {
    %c0_i32 = arith.constant 0 : i32
    %c0_i32_0 = arith.constant 0 : i32
    %c0_i32_1 = arith.constant 0 : i32
    return %c0_i32, %c0_i32_0 : i32, i32
  }
  func.func @transform_2(%arg0: i32, %arg1: i32) -> (i32, i32, i32) {
    %c0_i32 = arith.constant 0 : i32
    %c0_i32_0 = arith.constant 0 : i32
    %c0_i32_1 = arith.constant 0 : i32
    %c0_i32_2 = arith.constant 0 : i32
    return %c0_i32, %c0_i32_0, %c0_i32_1 : i32, i32, i32
  }
  func.func @transform_3(%arg0: i32, %arg1: i32) -> (i32, i32, i32) {
    %c0_i32 = arith.constant 0 : i32
    %c0_i32_0 = arith.constant 0 : i32
    %c0_i32_1 = arith.constant 0 : i32
    return %arg0, %c0_i32, %c0_i32_0 : i32, i32, i32
  }
  func.func @transform_4(%arg0: i32, %arg1: i32) -> (i32, i32) {
    %c0_i32 = arith.constant 0 : i32
    %c0_i32_0 = arith.constant 0 : i32
    %c0_i32_1 = arith.constant 0 : i32
    return %c0_i32, %c0_i32_0 : i32, i32
  }
}

module attributes {stable_mosaic.version = 11 : i64} {
  func.func @kernel(%arg0: memref<32x128xbf16, #tpu.memory_space<vmem>>, %arg1: memref<32x128xbf16, #tpu.memory_space<vmem>>, %arg2: memref<128x16xbf16, #tpu.memory_space<vmem>>, %arg3: memref<1x16xf32, #tpu.memory_space<vmem>>, %arg4: memref<80x32xbf16, #tpu.memory_space<vmem>>, %arg5: memref<1x32xf32, #tpu.memory_space<vmem>>, %arg6: memref<352x128xbf16, #tpu.memory_space<vmem>>, %arg7: memref<1x128xf32, #tpu.memory_space<vmem>>, %arg8: memref<128x128xbf16, #tpu.memory_space<vmem>>, %arg9: memref<1x128xf32, #tpu.memory_space<vmem>>, %arg10: memref<2x128xf32, #tpu.memory_space<vmem>>, %arg11: memref<2x128xf32, #tpu.memory_space<vmem>>) attributes {dimension_semantics = [], scalar_prefetch = 0 : i64, scratch_operands = 0 : i64, tpu.core_type = #tpu.core_type<tc>} {
    %c0 = arith.constant 0 : index
    %c0_0 = arith.constant 0 : index
    %0 = vector.load %arg2[%c0, %c0_0] : memref<128x16xbf16, #tpu.memory_space<vmem>>, vector<128x16xbf16>
    %c0_1 = arith.constant 0 : index
    %c0_2 = arith.constant 0 : index
    %1 = vector.load %arg3[%c0_1, %c0_2] : memref<1x16xf32, #tpu.memory_space<vmem>>, vector<1x16xf32>
    %c0_3 = arith.constant 0 : index
    %c0_4 = arith.constant 0 : index
    %2 = vector.load %arg0[%c0_3, %c0_4] : memref<32x128xbf16, #tpu.memory_space<vmem>>, vector<32x128xbf16>
    %cst = arith.constant dense<0.000000e+00> : vector<32x16xf32>
    %3 = tpu.matmul %2, %0, %cst {dimension_numbers = #tpu.dot_dimension_numbers<[1], [0], [0], [1], [0, 0, 1, 1], [], []>} : vector<32x128xbf16>, vector<128x16xbf16>, vector<32x16xf32> -> vector<32x16xf32>
    %4 = vector.broadcast %1 : vector<1x16xf32> to vector<32x16xf32>
    %5 = arith.addf %3, %4 : vector<32x16xf32>
    %cst_5 = arith.constant 0.000000e+00 : f32
    %6 = vector.broadcast %cst_5 : f32 to vector<32x16xf32>
    %7 = arith.maximumf %5, %6 : vector<32x16xf32>
    %c0_6 = arith.constant 0 : index
    %c0_7 = arith.constant 0 : index
    %8 = vector.load %arg1[%c0_6, %c0_7] : memref<32x128xbf16, #tpu.memory_space<vmem>>, vector<32x128xbf16>
    %cst_8 = arith.constant dense<0.000000e+00> : vector<32x16xf32>
    %9 = tpu.matmul %8, %0, %cst_8 {dimension_numbers = #tpu.dot_dimension_numbers<[1], [0], [0], [1], [0, 0, 1, 1], [], []>} : vector<32x128xbf16>, vector<128x16xbf16>, vector<32x16xf32> -> vector<32x16xf32>
    %10 = vector.broadcast %1 : vector<1x16xf32> to vector<32x16xf32>
    %11 = arith.addf %9, %10 : vector<32x16xf32>
    %cst_9 = arith.constant 0.000000e+00 : f32
    %12 = vector.broadcast %cst_9 : f32 to vector<32x16xf32>
    %13 = arith.maximumf %11, %12 : vector<32x16xf32>
    %14 = arith.maximumf %7, %13 : vector<32x16xf32>
    %15 = vector.extract_strided_slice %14 {offsets = [0, 0], sizes = [22, 16], strides = [1, 1]} : vector<32x16xf32> to vector<22x16xf32>
    %16 = vector.extract_strided_slice %14 {offsets = [2, 0], sizes = [22, 16], strides = [1, 1]} : vector<32x16xf32> to vector<22x16xf32>
    %17 = vector.extract_strided_slice %14 {offsets = [4, 0], sizes = [22, 16], strides = [1, 1]} : vector<32x16xf32> to vector<22x16xf32>
    %18 = vector.extract_strided_slice %14 {offsets = [6, 0], sizes = [22, 16], strides = [1, 1]} : vector<32x16xf32> to vector<22x16xf32>
    %19 = vector.extract_strided_slice %14 {offsets = [8, 0], sizes = [22, 16], strides = [1, 1]} : vector<32x16xf32> to vector<22x16xf32>
    %20 = tpu.concatenate %15, %16, %17, %18, %19 in 1 : vector<22x16xf32>, vector<22x16xf32>, vector<22x16xf32>, vector<22x16xf32>, vector<22x16xf32> -> vector<22x80xf32>
    %21 = arith.truncf %20 : vector<22x80xf32> to vector<22x80xbf16>
    %c0_10 = arith.constant 0 : index
    %c0_11 = arith.constant 0 : index
    %22 = vector.load %arg4[%c0_10, %c0_11] : memref<80x32xbf16, #tpu.memory_space<vmem>>, vector<80x32xbf16>
    %cst_12 = arith.constant dense<0.000000e+00> : vector<22x32xf32>
    %23 = tpu.matmul %21, %22, %cst_12 {dimension_numbers = #tpu.dot_dimension_numbers<[1], [0], [0], [1], [0, 0, 1, 1], [], []>} : vector<22x80xbf16>, vector<80x32xbf16>, vector<22x32xf32> -> vector<22x32xf32>
    %c0_13 = arith.constant 0 : index
    %c0_14 = arith.constant 0 : index
    %24 = vector.load %arg5[%c0_13, %c0_14] : memref<1x32xf32, #tpu.memory_space<vmem>>, vector<1x32xf32>
    %25 = vector.broadcast %24 : vector<1x32xf32> to vector<22x32xf32>
    %26 = arith.addf %23, %25 : vector<22x32xf32>
    %cst_15 = arith.constant 0.000000e+00 : f32
    %27 = vector.broadcast %cst_15 : f32 to vector<22x32xf32>
    %28 = arith.maximumf %26, %27 : vector<22x32xf32>
    %29 = vector.extract_strided_slice %28 {offsets = [0, 0], sizes = [2, 32], strides = [1, 1]} : vector<22x32xf32> to vector<2x32xf32>
    %30 = vector.extract_strided_slice %28 {offsets = [2, 0], sizes = [2, 32], strides = [1, 1]} : vector<22x32xf32> to vector<2x32xf32>
    %31 = vector.extract_strided_slice %28 {offsets = [4, 0], sizes = [2, 32], strides = [1, 1]} : vector<22x32xf32> to vector<2x32xf32>
    %32 = vector.extract_strided_slice %28 {offsets = [6, 0], sizes = [2, 32], strides = [1, 1]} : vector<22x32xf32> to vector<2x32xf32>
    %33 = vector.extract_strided_slice %28 {offsets = [8, 0], sizes = [2, 32], strides = [1, 1]} : vector<22x32xf32> to vector<2x32xf32>
    %34 = vector.extract_strided_slice %28 {offsets = [10, 0], sizes = [2, 32], strides = [1, 1]} : vector<22x32xf32> to vector<2x32xf32>
    %35 = vector.extract_strided_slice %28 {offsets = [12, 0], sizes = [2, 32], strides = [1, 1]} : vector<22x32xf32> to vector<2x32xf32>
    %36 = vector.extract_strided_slice %28 {offsets = [14, 0], sizes = [2, 32], strides = [1, 1]} : vector<22x32xf32> to vector<2x32xf32>
    %37 = vector.extract_strided_slice %28 {offsets = [16, 0], sizes = [2, 32], strides = [1, 1]} : vector<22x32xf32> to vector<2x32xf32>
    %38 = vector.extract_strided_slice %28 {offsets = [18, 0], sizes = [2, 32], strides = [1, 1]} : vector<22x32xf32> to vector<2x32xf32>
    %39 = vector.extract_strided_slice %28 {offsets = [20, 0], sizes = [2, 32], strides = [1, 1]} : vector<22x32xf32> to vector<2x32xf32>
    %40 = tpu.concatenate %29, %30, %31, %32, %33, %34, %35, %36, %37, %38, %39 in 1 : vector<2x32xf32>, vector<2x32xf32>, vector<2x32xf32>, vector<2x32xf32>, vector<2x32xf32>, vector<2x32xf32>, vector<2x32xf32>, vector<2x32xf32>, vector<2x32xf32>, vector<2x32xf32>, vector<2x32xf32> -> vector<2x352xf32>
    %41 = arith.truncf %40 : vector<2x352xf32> to vector<2x352xbf16>
    %c0_16 = arith.constant 0 : index
    %c0_17 = arith.constant 0 : index
    %42 = vector.load %arg6[%c0_16, %c0_17] : memref<352x128xbf16, #tpu.memory_space<vmem>>, vector<352x128xbf16>
    %cst_18 = arith.constant dense<0.000000e+00> : vector<2x128xf32>
    %43 = tpu.matmul %41, %42, %cst_18 {dimension_numbers = #tpu.dot_dimension_numbers<[1], [0], [0], [1], [0, 0, 1, 1], [], []>} : vector<2x352xbf16>, vector<352x128xbf16>, vector<2x128xf32> -> vector<2x128xf32>
    %c0_19 = arith.constant 0 : index
    %c0_20 = arith.constant 0 : index
    %44 = vector.load %arg7[%c0_19, %c0_20] : memref<1x128xf32, #tpu.memory_space<vmem>>, vector<1x128xf32>
    %45 = vector.broadcast %44 : vector<1x128xf32> to vector<2x128xf32>
    %46 = arith.addf %43, %45 : vector<2x128xf32>
    %cst_21 = arith.constant 0.000000e+00 : f32
    %47 = vector.broadcast %cst_21 : f32 to vector<2x128xf32>
    %48 = arith.maximumf %46, %47 : vector<2x128xf32>
    %49 = arith.truncf %48 : vector<2x128xf32> to vector<2x128xbf16>
    %c0_22 = arith.constant 0 : index
    %c0_23 = arith.constant 0 : index
    %50 = vector.load %arg8[%c0_22, %c0_23] : memref<128x128xbf16, #tpu.memory_space<vmem>>, vector<128x128xbf16>
    %cst_24 = arith.constant dense<0.000000e+00> : vector<2x128xf32>
    %51 = tpu.matmul %49, %50, %cst_24 {dimension_numbers = #tpu.dot_dimension_numbers<[1], [0], [0], [1], [0, 0, 1, 1], [], []>} : vector<2x128xbf16>, vector<128x128xbf16>, vector<2x128xf32> -> vector<2x128xf32>
    %c0_25 = arith.constant 0 : index
    %c0_26 = arith.constant 0 : index
    %52 = vector.load %arg9[%c0_25, %c0_26] : memref<1x128xf32, #tpu.memory_space<vmem>>, vector<1x128xf32>
    %53 = vector.broadcast %52 : vector<1x128xf32> to vector<2x128xf32>
    %54 = arith.addf %51, %53 : vector<2x128xf32>
    %cst_27 = arith.constant dense<0xFF800000> : vector<2xf32>
    %55 = vector.multi_reduction <maximumf>, %54, %cst_27 [1] : vector<2x128xf32> to vector<2xf32>
    %56 = vector.shape_cast %55 : vector<2xf32> to vector<2x1xf32>
    %57 = vector.broadcast %56 : vector<2x1xf32> to vector<2x128xf32>
    %58 = arith.subf %54, %57 : vector<2x128xf32>
    %59 = math.exp %58 : vector<2x128xf32>
    %cst_28 = arith.constant dense<0.000000e+00> : vector<2xf32>
    %60 = vector.multi_reduction <add>, %59, %cst_28 [1] : vector<2x128xf32> to vector<2xf32>
    %61 = vector.shape_cast %60 : vector<2xf32> to vector<2x1xf32>
    %62 = math.log %61 : vector<2x1xf32>
    %c0_29 = arith.constant 0 : index
    %c0_30 = arith.constant 0 : index
    %63 = vector.load %arg10[%c0_29, %c0_30] : memref<2x128xf32, #tpu.memory_space<vmem>>, vector<2x128xf32>
    tpu.vector_store %arg10[%c0_29, %c0_30], %48 {strides = array<i32>} : memref<2x128xf32, #tpu.memory_space<vmem>>, vector<2x128xf32>,
    %64 = vector.broadcast %56 : vector<2x1xf32> to vector<2x128xf32>
    %65 = arith.subf %54, %64 : vector<2x128xf32>
    %66 = vector.broadcast %62 : vector<2x1xf32> to vector<2x128xf32>
    %67 = arith.subf %65, %66 : vector<2x128xf32>
    %c0_31 = arith.constant 0 : index
    %c0_32 = arith.constant 0 : index
    %68 = vector.load %arg11[%c0_31, %c0_32] : memref<2x128xf32, #tpu.memory_space<vmem>>, vector<2x128xf32>
    tpu.vector_store %arg11[%c0_31, %c0_32], %67 {strides = array<i32>} : memref<2x128xf32, #tpu.memory_space<vmem>>, vector<2x128xf32>,
    return
  }
}

</mosaic_0001>

<llo_original>
// kernel: gnn_stack_forward.2
$region0: #{gnn_stack_forward.2}
  #allocation0 [shape = 'u32[]', space=smem, size = 0x4, offset = 0x4, fixed_abs, tag = 'smem constant byte address 0x4 - core index']
  #allocation1 [shape = 'u32[144,128]{1,0:T(1,128)}', space=vmem, size = 0x12000, scoped, tag = 'internal scratch']
  #allocation2 [shape = 'bf16[2,128,128]{2,1,0:T(8,128)(2,1)}', space=vmem, size = 0x10000, scoped, tag = 'scratch operand']
  %s0 = inlined_call_operand.vmem [shape: bf16[128,128], index: 0, kind: input, shape index: {}]
  %s1 = inlined_call_operand.vmem [shape: bf16[128,128], index: 1, kind: input, shape index: {}]
  %s2 = inlined_call_operand.vmem [shape: bf16[4,128,128], index: 2, kind: input, shape index: {}]
  %s3 = inlined_call_operand.vmem [shape: f32[4,1,128], index: 3, kind: input, shape index: {}]
  %s4 = inlined_call_operand.vmem [shape: f32[128,128], index: 4, kind: output, shape index: {}]
  %s5 = sld [smem:[#allocation0]]
  $region73: #{gnn_stack_forward.2} parent=0
    _
  %s7 = ssub.s32 1, %s5
  %s8 = scalar_select 0, %s7, %s5
  loop: start=0, step=1, limit=6
  $region2: #{gnn_stack_forward.2} parent=0 // loop_pre_header
    _
  $region3: #{gnn_stack_forward.2} parent=0 // loop_header
    %s10 = sphi 0, %s14
    %p11 = scmp.ge.s32.totalorder %s10, 6
    %s17 = sphi 0, %s29
    %s18 = sphi 0, %s25
    %s19 = sphi 0, %s17
    %s20 = sphi 0, %s18
    %s21 = sphi 0, %s19
    %s22 = sphi 0, %s20
    %s30 = sphi 0, %s30
    %s32 = sphi 0, %s30
    %s33 = sphi 0, %s32
    %s47 = sphi 0, %s33
    %s51 = sphi 0, %s51
    %s53 = sphi 0, %s51
    %s54 = sphi 0, %s53
    %s68 = sphi 0, %s54
    %s72 = sphi 0, %s72
    %s74 = sphi 0, %s72
    %s75 = sphi 0, %s74
    %s89 = sphi 0, %s75
    %s95 = sphi 0, %s97
    %s98 = sphi 0, %s95
    %s99 = sphi 0, %s98
    %s115 = sphi 0, %s99
    %s119 = sphi 0, %s119
    %s121 = sphi 0, %s119
    %s122 = sphi 0, %s121
    %s136 = sphi 0, %s122
  $region4: #{gnn_stack_forward.2} parent=0 // loop_header_branch
    %13 = sbr.rel (%p11) target = $region8
  $region5: #{gnn_stack_forward.2} parent=0 // loop_body
    %s15 = ssub.s32 %s10, 1
    %s16 = ssub.s32 %s10, 2
    %s23 = sadd.s32 1, %s18
    %p24 = scmp.ge.s32.totalorder %s23, 1
    %s25 = scalar_select %p24, 0, %s23
    %s26 = sadd.s32 1, %s17
    %s27 = scalar_select %p24, %s26, %s17
    %p28 = scmp.ge.s32.totalorder %s27, 4
    %s29 = scalar_select %p28, 0, %s27
    %s31 = sadd.s32 %s30, 1
    %p34 = scmp.eq.s32.totalorder %s10, 3
    %p35 = scmp.ne.s32.totalorder %s30, %s32
    %p36 = scmp.eq.s32.totalorder %s10, 0
    %p37 = por %p35, %p36
    %p38 = scmp.ne.s32.totalorder %s30, %s32
    %p39 = scmp.eq.s32.totalorder %s15, 3
    %p40 = por %p38, %p39
    %p41 = scmp.ne.s32.totalorder %s32, %s33
    %p42 = scmp.eq.s32.totalorder %s15, 0
    %p43 = por %p41, %p42
    %p44 = scmp.ne.s32.totalorder %s32, %s33
    %p45 = scmp.eq.s32.totalorder %s16, 3
    %p46 = por %p44, %p45
    %p48 = scmp.ne.s32.totalorder %s33, %s47
    %p49 = scmp.eq.s32.totalorder %s16, 0
    %p50 = por %p48, %p49
    %s52 = sadd.s32 %s51, 1
    %p55 = scmp.eq.s32.totalorder %s10, 3
    %p56 = scmp.ne.s32.totalorder %s51, %s53
    %p57 = scmp.eq.s32.totalorder %s10, 0
    %p58 = por %p56, %p57
    %p59 = scmp.ne.s32.totalorder %s51, %s53
    %p60 = scmp.eq.s32.totalorder %s15, 3
    %p61 = por %p59, %p60
    %p62 = scmp.ne.s32.totalorder %s53, %s54
    %p63 = scmp.eq.s32.totalorder %s15, 0
    %p64 = por %p62, %p63
    %p65 = scmp.ne.s32.totalorder %s53, %s54
    %p66 = scmp.eq.s32.totalorder %s16, 3
    %p67 = por %p65, %p66
    %p69 = scmp.ne.s32.totalorder %s54, %s68
    %p70 = scmp.eq.s32.totalorder %s16, 0
    %p71 = por %p69, %p70
    %s73 = sadd.s32 %s72, 1
    %p76 = scmp.eq.s32.totalorder %s10, 3
    %p77 = scmp.ne.s32.totalorder %s72, %s74
    %p78 = scmp.eq.s32.totalorder %s10, 0
    %p79 = por %p77, %p78
    %p80 = scmp.ne.s32.totalorder %s72, %s74
    %p81 = scmp.eq.s32.totalorder %s15, 3
    %p82 = por %p80, %p81
    %p83 = scmp.ne.s32.totalorder %s74, %s75
    %p84 = scmp.eq.s32.totalorder %s15, 0
    %p85 = por %p83, %p84
    %p86 = scmp.ne.s32.totalorder %s74, %s75
    %p87 = scmp.eq.s32.totalorder %s16, 3
    %p88 = por %p86, %p87
    %p90 = scmp.ne.s32.totalorder %s75, %s89
    %p91 = scmp.eq.s32.totalorder %s16, 0
    %p92 = por %p90, %p91
    %s93 = ssub.s32 %s17, %s29
    %p94 = scmp.eq.s32.totalorder %s93, 0
    %s96 = sadd.s32 %s95, 1
    %s97 = scalar_select %p94, %s95, %s96
    %p100 = pneg %p94
    %p101 = scmp.eq.s32.totalorder %s10, 3
    %p102 = por %p100, %p101
    %p103 = scmp.ne.s32.totalorder %s95, %s98
    %p104 = scmp.eq.s32.totalorder %s10, 0
    %p105 = por %p103, %p104
    %p106 = scmp.ne.s32.totalorder %s95, %s98
    %p107 = scmp.eq.s32.totalorder %s15, 3
    %p108 = por %p106, %p107
    %p109 = scmp.ne.s32.totalorder %s98, %s99
    %p110 = scmp.eq.s32.totalorder %s15, 0
    %p111 = por %p109, %p110
    %p112 = scmp.ne.s32.totalorder %s98, %s99
    %p113 = scmp.eq.s32.totalorder %s16, 3
    %p114 = por %p112, %p113
    %p116 = scmp.ne.s32.totalorder %s99, %s115
    %p117 = scmp.eq.s32.totalorder %s16, 0
    %p118 = por %p116, %p117
    %s120 = sadd.s32 %s119, 1
    %p123 = scmp.eq.s32.totalorder %s10, 3
    %p124 = scmp.ne.s32.totalorder %s119, %s121
    %p125 = scmp.eq.s32.totalorder %s10, 0
    %p126 = por %p124, %p125
    %p127 = scmp.ne.s32.totalorder %s119, %s121
    %p128 = scmp.eq.s32.totalorder %s15, 3
    %p129 = por %p127, %p128
    %p130 = scmp.ne.s32.totalorder %s121, %s122
    %p131 = scmp.eq.s32.totalorder %s15, 0
    %p132 = por %p130, %p131
    %p133 = scmp.ne.s32.totalorder %s121, %s122
    %p134 = scmp.eq.s32.totalorder %s16, 3
    %p135 = por %p133, %p134
    %p137 = scmp.ne.s32.totalorder %s122, %s136
    %p138 = scmp.eq.s32.totalorder %s16, 0
    %p139 = por %p137, %p138
    %p140 = scmp.le.s32.totalorder 1, %s10
    %p141 = scmp.lt.s32.totalorder %s10, 5
    %p142 = pnand %p140, %p141
    %p143 = pneg %p142
    // Predicated region
    $region9: #{gnn_stack_forward.2} parent=5 // pred_check
      _
    $region10: #{gnn_stack_forward.2} parent=5 // pred_check_branch
      %145 = sbr.rel (%p142) target = $region12
    $region11: #{gnn_stack_forward.2} parent=5 // pred_region
      %s146 = ssub.s32 %s10, 1
      // Predicated region
      $region13: #{gnn_stack_forward.2} parent=11 // pred_check
        %p147 = pneg %p43
      $region14: #{gnn_stack_forward.2} parent=11 // pred_check_branch
        %149 = sbr.rel (%p147) target = $region16
      $region15: #{gnn_stack_forward.2} parent=11 // pred_region
        _
      $region16: #{gnn_stack_forward.2} parent=11 // pred_fallthru
        _
      // Predicated region
      $region17: #{gnn_stack_forward.2} parent=11 // pred_check
        %p150 = pneg %p64
      $region18: #{gnn_stack_forward.2} parent=11 // pred_check_branch
        %152 = sbr.rel (%p150) target = $region20
      $region19: #{gnn_stack_forward.2} parent=11 // pred_region
        _
      $region20: #{gnn_stack_forward.2} parent=11 // pred_fallthru
        _
      // Predicated region
      $region21: #{gnn_stack_forward.2} parent=11 // pred_check
        %p153 = pneg %p85
      $region22: #{gnn_stack_forward.2} parent=11 // pred_check_branch
        %155 = sbr.rel (%p153) target = $region24
      $region23: #{gnn_stack_forward.2} parent=11 // pred_region
        _
      $region24: #{gnn_stack_forward.2} parent=11 // pred_fallthru
        _
    $region12: #{gnn_stack_forward.2} parent=5 // pred_fallthru
      _
    %p156 = scmp.lt.s32.totalorder %s10, 4
    // Predicated region
    $region25: #{gnn_stack_forward.2} parent=5 // pred_check
      %p157 = pneg %p156
    $region26: #{gnn_stack_forward.2} parent=5 // pred_check_branch
      %159 = sbr.rel (%p157) target = $region28
    $region27: #{gnn_stack_forward.2} parent=5 // pred_region
      // Predicated region
      $region29: #{gnn_stack_forward.2} parent=27 // pred_check
        %p160 = pneg %p105
      $region30: #{gnn_stack_forward.2} parent=27 // pred_check_branch
        %162 = sbr.rel (%p160) target = $region32
      $region31: #{gnn_stack_forward.2} parent=27 // pred_region
        %p163 = scmp.lt.s32.totalorder %s17, 3
        %s164 = scalar_select %p163, %s17, 3
        %s165 = scalar_lea.vmem %s3, %s164
      $region32: #{gnn_stack_forward.2} parent=27 // pred_fallthru
        _
    $region28: #{gnn_stack_forward.2} parent=5 // pred_fallthru
      _
    %p166 = scmp.le.s32.totalorder 1, %s10
    %p167 = scmp.lt.s32.totalorder %s10, 5
    %p168 = pnand %p166, %p167
    %p169 = pneg %p168
    // Predicated region
    $region33: #{gnn_stack_forward.2} parent=5 // pred_check
      _
    $region34: #{gnn_stack_forward.2} parent=5 // pred_check_branch
      %171 = sbr.rel (%p168) target = $region36
    $region35: #{gnn_stack_forward.2} parent=5 // pred_region
      %s172 = ssub.s32 %s10, 1
      %p173 = pneg %p43
      %p174 = pneg %p40
      %p175 = pneg %p64
      %p176 = pneg %p61
      %p177 = pneg %p85
      %p178 = pneg %p82
      %p179 = scmp.lt.s32.totalorder %s19, 3
      %s180 = scalar_select %p179, %s19, 3
      %s181 = scalar_lea.vmem %s3, %s180
      %p182 = pneg %p111
      %p183 = pneg %p108
      %p184 = pneg %p132
      %p185 = pneg %p129
      %p186 = scmp.lt.s32.totalorder %s19, 3
      %s187 = scalar_select %p186, %s19, 3
      %s188 = scalar_lea.vmem %s3, %s187
      %s190 = smul.u32 %s20, 128
      %p191 = scmp.eq.s32.totalorder %s19, 0
      %p192 = scmp.eq.s32.totalorder %s20, 0
      %p193 = pnand %p191, %p192
      %p194 = pneg %p193
      // Predicated region
      $region37: #{gnn_stack_forward.2} parent=35 // pred_check
        _
      $region38: #{gnn_stack_forward.2} parent=35 // pred_check_branch
        %196 = sbr.rel (%p193) target = $region40
      $region39: #{gnn_stack_forward.2} parent=35 // pred_region
        %v197 = vld [vmem:[%s1] sm:$0xf]
        %v198 = vld [vmem:[%s1 + $0x4] sm:$0xf]
        %v199 = vld [vmem:[%s1 + $0x8] sm:$0xf]
        %v200 = vld [vmem:[%s1 + $0xc] sm:$0xf]
        %v201 = vld [vmem:[%s1 + $0x10] sm:$0xf]
        %v202 = vld [vmem:[%s1 + $0x14] sm:$0xf]
        %v203 = vld [vmem:[%s1 + $0x18] sm:$0xf]
        %v204 = vld [vmem:[%s1 + $0x1c] sm:$0xf]
        %v205 = vld [vmem:[%s1 + $0x20] sm:$0xf]
        %v206 = vld [vmem:[%s1 + $0x24] sm:$0xf]
        %v207 = vld [vmem:[%s1 + $0x28] sm:$0xf]
        %v208 = vld [vmem:[%s1 + $0x2c] sm:$0xf]
        %v209 = vld [vmem:[%s1 + $0x30] sm:$0xf]
        %v210 = vld [vmem:[%s1 + $0x34] sm:$0xf]
        %v211 = vld [vmem:[%s1 + $0x38] sm:$0xf]
        %v212 = vld [vmem:[%s1 + $0x3c] sm:$0xf]
        %v213 = vld [vmem:[%s2] sm:$0xf]
        %v214 = vld [vmem:[%s2 + $0x4] sm:$0xf]
        %v215 = vld [vmem:[%s2 + $0x8] sm:$0xf]
        %v216 = vld [vmem:[%s2 + $0xc] sm:$0xf]
        %v217 = vld [vmem:[%s2 + $0x10] sm:$0xf]
        %v218 = vld [vmem:[%s2 + $0x14] sm:$0xf]
        %v219 = vld [vmem:[%s2 + $0x18] sm:$0xf]
        %v220 = vld [vmem:[%s2 + $0x1c] sm:$0xf]
        %v221 = vld [vmem:[%s2 + $0x20] sm:$0xf]
        %v222 = vld [vmem:[%s2 + $0x24] sm:$0xf]
        %v223 = vld [vmem:[%s2 + $0x28] sm:$0xf]
        %v224 = vld [vmem:[%s2 + $0x2c] sm:$0xf]
        %v225 = vld [vmem:[%s2 + $0x30] sm:$0xf]
        %v226 = vld [vmem:[%s2 + $0x34] sm:$0xf]
        %v227 = vld [vmem:[%s2 + $0x38] sm:$0xf]
        %v228 = vld [vmem:[%s2 + $0x3c] sm:$0xf]
        %v245 = vunpack.c.l.b16 %v197
        %v246 = vunpack.c.l.b16 %v198
        %v247 = vunpack.c.l.b16 %v199
        %v248 = vunpack.c.l.b16 %v200
        %v249 = vunpack.c.l.b16 %v201
        %v250 = vunpack.c.l.b16 %v202
        %v251 = vunpack.c.l.b16 %v203
        %v252 = vunpack.c.l.b16 %v204
        %v253 = vunpack.c.l.b16 %v205
        %v254 = vunpack.c.l.b16 %v206
        %v255 = vunpack.c.l.b16 %v207
        %v256 = vunpack.c.l.b16 %v208
        %v257 = vunpack.c.l.b16 %v209
        %v258 = vunpack.c.l.b16 %v210
        %v259 = vunpack.c.l.b16 %v211
        %v260 = vunpack.c.l.b16 %v212
        %v261 = vpack.c.b16 %v246, %v245
        %v262 = vpack.c.b16 %v248, %v247
        %v263 = vpack.c.b16 %v250, %v249
        %v264 = vpack.c.b16 %v252, %v251
        %v265 = vpack.c.b16 %v254, %v253
        %v266 = vpack.c.b16 %v256, %v255
        %v267 = vpack.c.b16 %v258, %v257
        %v268 = vpack.c.b16 %v260, %v259
        %v293 = vunpack.c.l.b16 %v213
        %v294 = vunpack.c.l.b16 %v214
        %v295 = vunpack.c.l.b16 %v215
        %v296 = vunpack.c.l.b16 %v216
        %v297 = vunpack.c.l.b16 %v217
        %v298 = vunpack.c.l.b16 %v218
        %v299 = vunpack.c.l.b16 %v219
        %v300 = vunpack.c.l.b16 %v220
        %v301 = vunpack.c.l.b16 %v221
        %v302 = vunpack.c.l.b16 %v222
        %v303 = vunpack.c.l.b16 %v223
        %v304 = vunpack.c.l.b16 %v224
        %v305 = vunpack.c.l.b16 %v225
        %v306 = vunpack.c.l.b16 %v226
        %v307 = vunpack.c.l.b16 %v227
        %v308 = vunpack.c.l.b16 %v228
        %v309 = vpack.c.b16 %v294, %v293
        %v310 = vpack.c.b16 %v296, %v295
        %v311 = vpack.c.b16 %v298, %v297
        %v312 = vpack.c.b16 %v300, %v299
        %v313 = vpack.c.b16 %v302, %v301
        %v314 = vpack.c.b16 %v304, %v303
        %v315 = vpack.c.b16 %v306, %v305
        %v316 = vpack.c.b16 %v308, %v307
        %325 = vmatprep.subr.bf16.mxu0 0
        %326 = vmatpush1.bf16.msra.mxu0 %v316
        %327 = vmatprep.subr.bf16.mxu0 0
        %328 = vmatpush1.bf16.msra.mxu0 %v315
        %329 = vmatprep.subr.bf16.mxu0 0
        %330 = vmatpush1.bf16.msra.mxu0 %v314
        %331 = vmatprep.subr.bf16.mxu0 0
        %332 = vmatpush1.bf16.msra.mxu0 %v313
        %333 = vmatprep.subr.bf16.mxu0 0
        %334 = vmatpush1.bf16.msra.mxu0 %v312
        %335 = vmatprep.subr.bf16.mxu0 0
        %336 = vmatpush1.bf16.msra.mxu0 %v311
        %337 = vmatprep.subr.bf16.mxu0 0
        %338 = vmatpush1.bf16.msra.mxu0 %v310
        %339 = vmatprep.subr.bf16.mxu0 0
        %340 = vmatpush1.bf16.msra.mxu0 %v309
        %341 = vmatprep.subr.bf16.mxu0 0
        %342 = vmatpush2.bf16.msra.mxu0 0
        %343 = vmatprep.subr.bf16.mxu0 0
        %344 = vmatpush2.bf16.msra.mxu0 0
        %345 = vmatprep.subr.bf16.mxu0 0
        %346 = vmatpush2.bf16.msra.mxu0 0
        %347 = vmatprep.subr.bf16.mxu0 0
        %348 = vmatpush2.bf16.msra.mxu0 0
        %349 = vmatprep.subr.bf16.mxu0 0
        %350 = vmatpush2.bf16.msra.mxu0 0
        %351 = vmatprep.subr.bf16.mxu0 0
        %352 = vmatpush2.bf16.msra.mxu0 0
        %353 = vmatprep.subr.bf16.mxu0 0
        %354 = vmatpush2.bf16.msra.mxu0 0
        %355 = vmatprep.subr.bf16.mxu0 0
        %356 = vmatpush2.bf16.msra.mxu0 0
        %357 = vmatprep.mubr.bf16.mxu0 0
        %358 = vmatmul.mubr.bf16.gmra.mxu0 %v261
        %v359 = vpop.f32.mrf.mxu0
        %v360 = vadd.f32 0.0, %v359
        %v361 = vpop.f32.mrf.mxu0
        %v362 = vpop.f32.mrf.mxu0
        %v363 = vadd.f32 0.0, %v362
        %v364 = vpop.f32.mrf.mxu0
        %365 = vmatprep.mubr.bf16.mxu0 0
        %366 = vmatmul.mubr.bf16.gmra.mxu0 %v262
        %v367 = vpop.f32.mrf.mxu0
        %v368 = vadd.f32 0.0, %v367
        %v369 = vpop.f32.mrf.mxu0
        %v370 = vpop.f32.mrf.mxu0
        %v371 = vadd.f32 0.0, %v370
        %v372 = vpop.f32.mrf.mxu0
        %373 = vmatprep.mubr.bf16.mxu0 0
        %374 = vmatmul.mubr.bf16.gmra.mxu0 %v263
        %v375 = vpop.f32.mrf.mxu0
        %v376 = vadd.f32 0.0, %v375
        %v377 = vpop.f32.mrf.mxu0
        %v378 = vpop.f32.mrf.mxu0
        %v379 = vadd.f32 0.0, %v378
        %v380 = vpop.f32.mrf.mxu0
        %381 = vmatprep.mubr.bf16.mxu0 0
        %382 = vmatmul.mubr.bf16.gmra.mxu0 %v264
        %v383 = vpop.f32.mrf.mxu0
        %v384 = vadd.f32 0.0, %v383
        %v385 = vpop.f32.mrf.mxu0
        %v386 = vpop.f32.mrf.mxu0
        %v387 = vadd.f32 0.0, %v386
        %v388 = vpop.f32.mrf.mxu0
        %389 = vmatprep.mubr.bf16.mxu0 0
        %390 = vmatmul.mubr.bf16.gmra.mxu0 %v265
        %v391 = vpop.f32.mrf.mxu0
        %v392 = vadd.f32 0.0, %v391
        %v393 = vpop.f32.mrf.mxu0
        %v394 = vpop.f32.mrf.mxu0
        %v395 = vadd.f32 0.0, %v394
        %v396 = vpop.f32.mrf.mxu0
        %397 = vmatprep.mubr.bf16.mxu0 0
        %398 = vmatmul.mubr.bf16.gmra.mxu0 %v266
        %v399 = vpop.f32.mrf.mxu0
        %v400 = vadd.f32 0.0, %v399
        %v401 = vpop.f32.mrf.mxu0
        %v402 = vpop.f32.mrf.mxu0
        %v403 = vadd.f32 0.0, %v402
        %v404 = vpop.f32.mrf.mxu0
        %405 = vmatprep.mubr.bf16.mxu0 0
        %406 = vmatmul.mubr.bf16.gmra.mxu0 %v267
        %v407 = vpop.f32.mrf.mxu0
        %v408 = vadd.f32 0.0, %v407
        %v409 = vpop.f32.mrf.mxu0
        %v410 = vpop.f32.mrf.mxu0
        %v411 = vadd.f32 0.0, %v410
        %v412 = vpop.f32.mrf.mxu0
        %413 = vmatprep.mubr.bf16.mxu0 0
        %414 = vmatmul.mubr.bf16.gmra.mxu0 %v268
        %v415 = vpop.f32.mrf.mxu0
        %v416 = vadd.f32 0.0, %v415
        %v417 = vpop.f32.mrf.mxu0
        %v418 = vpop.f32.mrf.mxu0
        %v419 = vadd.f32 0.0, %v418
        %v420 = vpop.f32.mrf.mxu0
        %421 = vdwg.mxu0
        %v422 = vpack.c.bf16 %v363, %v360
        %v423 = vpack.c.bf16 %v371, %v368
        %v424 = vpack.c.bf16 %v379, %v376
        %v425 = vpack.c.bf16 %v387, %v384
        %v426 = vpack.c.bf16 %v395, %v392
        %v427 = vpack.c.bf16 %v403, %v400
        %v428 = vpack.c.bf16 %v411, %v408
        %v429 = vpack.c.bf16 %v419, %v416
        %v438 = vunpack.c.l.b16 %v422
        %v439 = vunpack.c.h.b16 %v422
        %v440 = vunpack.c.l.b16 %v423
        %v441 = vunpack.c.h.b16 %v423
        %v442 = vunpack.c.l.b16 %v424
        %v443 = vunpack.c.h.b16 %v424
        %v444 = vunpack.c.l.b16 %v425
        %v445 = vunpack.c.h.b16 %v425
        %v446 = vunpack.c.l.b16 %v426
        %v447 = vunpack.c.h.b16 %v426
        %v448 = vunpack.c.l.b16 %v427
        %v449 = vunpack.c.h.b16 %v427
        %v450 = vunpack.c.l.b16 %v428
        %v451 = vunpack.c.h.b16 %v428
        %v452 = vunpack.c.l.b16 %v429
        %v453 = vunpack.c.h.b16 %v429
        %v454 = vpack.c.b16 %v438, %v438
        %v455 = vpack.c.b16 %v439, %v439
        %v456 = vpack.c.b16 %v440, %v440
        %v457 = vpack.c.b16 %v441, %v441
        %v458 = vpack.c.b16 %v442, %v442
        %v459 = vpack.c.b16 %v443, %v443
        %v460 = vpack.c.b16 %v444, %v444
        %v461 = vpack.c.b16 %v445, %v445
        %v462 = vpack.c.b16 %v446, %v446
        %v463 = vpack.c.b16 %v447, %v447
        %v464 = vpack.c.b16 %v448, %v448
        %v465 = vpack.c.b16 %v449, %v449
        %v466 = vpack.c.b16 %v450, %v450
        %v467 = vpack.c.b16 %v451, %v451
        %v468 = vpack.c.b16 %v452, %v452
        %v469 = vpack.c.b16 %v453, %v453
        %486 = vst [vmem:[#allocation2] sm:$0xf] %v454
        %487 = vst [vmem:[#allocation2 + $0x4] sm:$0xf] %v455
        %488 = vst [vmem:[#allocation2 + $0x8] sm:$0xf] %v456
        %489 = vst [vmem:[#allocation2 + $0xc] sm:$0xf] %v457
        %490 = vst [vmem:[#allocation2 + $0x10] sm:$0xf] %v458
        %491 = vst [vmem:[#allocation2 + $0x14] sm:$0xf] %v459
        %492 = vst [vmem:[#allocation2 + $0x18] sm:$0xf] %v460
        %493 = vst [vmem:[#allocation2 + $0x1c] sm:$0xf] %v461
        %494 = vst [vmem:[#allocation2 + $0x20] sm:$0xf] %v462
        %495 = vst [vmem:[#allocation2 + $0x24] sm:$0xf] %v463
        %496 = vst [vmem:[#allocation2 + $0x28] sm:$0xf] %v464
        %497 = vst [vmem:[#allocation2 + $0x2c] sm:$0xf] %v465
        %498 = vst [vmem:[#allocation2 + $0x30] sm:$0xf] %v466
        %499 = vst [vmem:[#allocation2 + $0x34] sm:$0xf] %v467
        %500 = vst [vmem:[#allocation2 + $0x38] sm:$0xf] %v468
        %501 = vst [vmem:[#allocation2 + $0x3c] sm:$0xf] %v469
      $region40: #{gnn_stack_forward.2} parent=35 // pred_fallthru
        _
      %s502 = sshra.s32 %s190, 3
      %s503 = sand.u32 %s190, 7
      %s504 = smul.addr %s502, 4
      %s505 = scalar_lea.vmem %s0, %s504
      %v506 = vld [vmem:[%s505] sm:$0xf]
      %v507 = vld [vmem:[%s505 + $0x4] sm:$0xf]
      %v508 = vld [vmem:[%s505 + $0x8] sm:$0xf]
      %v509 = vld [vmem:[%s505 + $0xc] sm:$0xf]
      %v510 = vld [vmem:[%s505 + $0x10] sm:$0xf]
      %v511 = vld [vmem:[%s505 + $0x14] sm:$0xf]
      %v512 = vld [vmem:[%s505 + $0x18] sm:$0xf]
      %v513 = vld [vmem:[%s505 + $0x1c] sm:$0xf]
      %v514 = vld [vmem:[%s505 + $0x20] sm:$0xf]
      %v515 = vld [vmem:[%s505 + $0x24] sm:$0xf]
      %v516 = vld [vmem:[%s505 + $0x28] sm:$0xf]
      %v517 = vld [vmem:[%s505 + $0x2c] sm:$0xf]
      %v518 = vld [vmem:[%s505 + $0x30] sm:$0xf]
      %v519 = vld [vmem:[%s505 + $0x34] sm:$0xf]
      %v520 = vld [vmem:[%s505 + $0x38] sm:$0xf]
      %v521 = vld [vmem:[%s505 + $0x3c] sm:$0xf]
      %p522 = scmp.lt.s32.totalorder %s19, 0
      %s523 = ssub.s32 0, %s19
      %s524 = scalar_select %p522, %s523, %s19
      %s525 = sand.u32 %s524, 1
      %s526 = ssub.s32 0, %s525
      %s527 = scalar_select %p522, %s526, %s525
      %p528 = scmp.ne.s32.totalorder %s527, 0
      %p529 = scmp.lt.s32.totalorder %s527, 0
      %p530 = pnand %p529, %p528
      %p531 = pneg %p530
      %s532 = sadd.s32 %s527, 2
      %s533 = scalar_select %p531, %s532, %s527
      %s534 = smul.u32 %s533, 16
      %s535 = smul.addr %s534, 4
      %s536 = scalar_lea.vmem [#allocation2], %s535
      %v537 = vld [vmem:[%s536] sm:$0xf]
      %v538 = vld [vmem:[%s536 + $0x4] sm:$0xf]
      %v539 = vld [vmem:[%s536 + $0x8] sm:$0xf]
      %v540 = vld [vmem:[%s536 + $0xc] sm:$0xf]
      %v541 = vld [vmem:[%s536 + $0x10] sm:$0xf]
      %v542 = vld [vmem:[%s536 + $0x14] sm:$0xf]
      %v543 = vld [vmem:[%s536 + $0x18] sm:$0xf]
      %v544 = vld [vmem:[%s536 + $0x1c] sm:$0xf]
      %v545 = vld [vmem:[%s536 + $0x20] sm:$0xf]
      %v546 = vld [vmem:[%s536 + $0x24] sm:$0xf]
      %v547 = vld [vmem:[%s536 + $0x28] sm:$0xf]
      %v548 = vld [vmem:[%s536 + $0x2c] sm:$0xf]
      %v549 = vld [vmem:[%s536 + $0x30] sm:$0xf]
      %v550 = vld [vmem:[%s536 + $0x34] sm:$0xf]
      %v551 = vld [vmem:[%s536 + $0x38] sm:$0xf]
      %v552 = vld [vmem:[%s536 + $0x3c] sm:$0xf]
      %v553 = vld [vmem:[%s188] sm:$0x1]
      %v555 = vlaneseq
      %v556 = vshrl.u32 %v555, 7
      %v557 = vsub.s32 0, %v556
      %v558 = vrot.slane %v553, %v557
      %v576 = vunpack.c.l.b16 %v506
      %v577 = vunpack.c.l.b16 %v507
      %v578 = vunpack.c.l.b16 %v508
      %v579 = vunpack.c.l.b16 %v509
      %v580 = vunpack.c.l.b16 %v510
      %v581 = vunpack.c.l.b16 %v511
      %v582 = vunpack.c.l.b16 %v512
      %v583 = vunpack.c.l.b16 %v513
      %v584 = vunpack.c.l.b16 %v514
      %v585 = vunpack.c.l.b16 %v515
      %v586 = vunpack.c.l.b16 %v516
      %v587 = vunpack.c.l.b16 %v517
      %v588 = vunpack.c.l.b16 %v518
      %v589 = vunpack.c.l.b16 %v519
      %v590 = vunpack.c.l.b16 %v520
      %v591 = vunpack.c.l.b16 %v521
      %v592 = vpack.c.b16 %v577, %v576
      %v593 = vpack.c.b16 %v579, %v578
      %v594 = vpack.c.b16 %v581, %v580
      %v595 = vpack.c.b16 %v583, %v582
      %v596 = vpack.c.b16 %v585, %v584
      %v597 = vpack.c.b16 %v587, %v586
      %v598 = vpack.c.b16 %v589, %v588
      %v599 = vpack.c.b16 %v591, %v590
      %v624 = vunpack.c.l.b16 %v537
      %v625 = vunpack.c.l.b16 %v538
      %v626 = vunpack.c.l.b16 %v539
      %v627 = vunpack.c.l.b16 %v540
      %v628 = vunpack.c.l.b16 %v541
      %v629 = vunpack.c.l.b16 %v542
      %v630 = vunpack.c.l.b16 %v543
      %v631 = vunpack.c.l.b16 %v544
      %v632 = vunpack.c.l.b16 %v545
      %v633 = vunpack.c.l.b16 %v546
      %v634 = vunpack.c.l.b16 %v547
      %v635 = vunpack.c.l.b16 %v548
      %v636 = vunpack.c.l.b16 %v549
      %v637 = vunpack.c.l.b16 %v550
      %v638 = vunpack.c.l.b16 %v551
      %v639 = vunpack.c.l.b16 %v552
      %v640 = vpack.c.b16 %v625, %v624
      %v641 = vpack.c.b16 %v627, %v626
      %v642 = vpack.c.b16 %v629, %v628
      %v643 = vpack.c.b16 %v631, %v630
      %v644 = vpack.c.b16 %v633, %v632
      %v645 = vpack.c.b16 %v635, %v634
      %v646 = vpack.c.b16 %v637, %v636
      %v647 = vpack.c.b16 %v639, %v638
      %656 = vmatprep.subr.bf16.mxu0 0
      %657 = vmatpush1.bf16.msra.mxu0 %v647
      %658 = vmatprep.subr.bf16.mxu0 0
      %659 = vmatpush1.bf16.msra.mxu0 %v646
      %660 = vmatprep.subr.bf16.mxu0 0
      %661 = vmatpush1.bf16.msra.mxu0 %v645
      %662 = vmatprep.subr.bf16.mxu0 0
      %663 = vmatpush1.bf16.msra.mxu0 %v644
      %664 = vmatprep.subr.bf16.mxu0 0
      %665 = vmatpush1.bf16.msra.mxu0 %v643
      %666 = vmatprep.subr.bf16.mxu0 0
      %667 = vmatpush1.bf16.msra.mxu0 %v642
      %668 = vmatprep.subr.bf16.mxu0 0
      %669 = vmatpush1.bf16.msra.mxu0 %v641
      %670 = vmatprep.subr.bf16.mxu0 0
      %671 = vmatpush1.bf16.msra.mxu0 %v640
      %672 = vmatprep.subr.bf16.mxu0 0
      %673 = vmatpush2.bf16.msra.mxu0 0
      %674 = vmatprep.subr.bf16.mxu0 0
      %675 = vmatpush2.bf16.msra.mxu0 0
      %676 = vmatprep.subr.bf16.mxu0 0
      %677 = vmatpush2.bf16.msra.mxu0 0
      %678 = vmatprep.subr.bf16.mxu0 0
      %679 = vmatpush2.bf16.msra.mxu0 0
      %680 = vmatprep.subr.bf16.mxu0 0
      %681 = vmatpush2.bf16.msra.mxu0 0
      %682 = vmatprep.subr.bf16.mxu0 0
      %683 = vmatpush2.bf16.msra.mxu0 0
      %684 = vmatprep.subr.bf16.mxu0 0
      %685 = vmatpush2.bf16.msra.mxu0 0
      %686 = vmatprep.subr.bf16.mxu0 0
      %687 = vmatpush2.bf16.msra.mxu0 0
      %688 = vmatprep.mubr.bf16.mxu0 0
      %689 = vmatmul.mubr.bf16.gmra.mxu0 %v592
      %v690 = vpop.f32.mrf.mxu0
      %v691 = vadd.f32 %v558, %v690
      %v692 = vpop.f32.mrf.mxu0
      %v693 = vpop.f32.mrf.mxu0
      %v694 = vadd.f32 %v558, %v693
      %v695 = vpop.f32.mrf.mxu0
      %696 = vmatprep.mubr.bf16.mxu0 0
      %697 = vmatmul.mubr.bf16.gmra.mxu0 %v593
      %v698 = vpop.f32.mrf.mxu0
      %v699 = vadd.f32 %v558, %v698
      %v700 = vpop.f32.mrf.mxu0
      %v701 = vpop.f32.mrf.mxu0
      %v702 = vadd.f32 %v558, %v701
      %v703 = vpop.f32.mrf.mxu0
      %704 = vmatprep.mubr.bf16.mxu0 0
      %705 = vmatmul.mubr.bf16.gmra.mxu0 %v594
      %v706 = vpop.f32.mrf.mxu0
      %v707 = vadd.f32 %v558, %v706
      %v708 = vpop.f32.mrf.mxu0
      %v709 = vpop.f32.mrf.mxu0
      %v710 = vadd.f32 %v558, %v709
      %v711 = vpop.f32.mrf.mxu0
      %712 = vmatprep.mubr.bf16.mxu0 0
      %713 = vmatmul.mubr.bf16.gmra.mxu0 %v595
      %v714 = vpop.f32.mrf.mxu0
      %v715 = vadd.f32 %v558, %v714
      %v716 = vpop.f32.mrf.mxu0
      %v717 = vpop.f32.mrf.mxu0
      %v718 = vadd.f32 %v558, %v717
      %v719 = vpop.f32.mrf.mxu0
      %720 = vmatprep.mubr.bf16.mxu0 0
      %721 = vmatmul.mubr.bf16.gmra.mxu0 %v596
      %v722 = vpop.f32.mrf.mxu0
      %v723 = vadd.f32 %v558, %v722
      %v724 = vpop.f32.mrf.mxu0
      %v725 = vpop.f32.mrf.mxu0
      %v726 = vadd.f32 %v558, %v725
      %v727 = vpop.f32.mrf.mxu0
      %728 = vmatprep.mubr.bf16.mxu0 0
      %729 = vmatmul.mubr.bf16.gmra.mxu0 %v597
      %v730 = vpop.f32.mrf.mxu0
      %v731 = vadd.f32 %v558, %v730
      %v732 = vpop.f32.mrf.mxu0
      %v733 = vpop.f32.mrf.mxu0
      %v734 = vadd.f32 %v558, %v733
      %v735 = vpop.f32.mrf.mxu0
      %736 = vmatprep.mubr.bf16.mxu0 0
      %737 = vmatmul.mubr.bf16.gmra.mxu0 %v598
      %v738 = vpop.f32.mrf.mxu0
      %v739 = vadd.f32 %v558, %v738
      %v740 = vpop.f32.mrf.mxu0
      %v741 = vpop.f32.mrf.mxu0
      %v742 = vadd.f32 %v558, %v741
      %v743 = vpop.f32.mrf.mxu0
      %744 = vmatprep.mubr.bf16.mxu0 0
      %745 = vmatmul.mubr.bf16.gmra.mxu0 %v599
      %v746 = vpop.f32.mrf.mxu0
      %v747 = vadd.f32 %v558, %v746
      %v748 = vpop.f32.mrf.mxu0
      %v749 = vpop.f32.mrf.mxu0
      %v750 = vadd.f32 %v558, %v749
      %v751 = vpop.f32.mrf.mxu0
      %752 = vdwg.mxu0
      %v753 = vtanh.pop %v691
      %v754 = vtanh.pop %v694
      %v755 = vtanh.pop %v699
      %v756 = vtanh.pop %v702
      %v757 = vtanh.pop %v707
      %v758 = vtanh.pop %v710
      %v759 = vtanh.pop %v715
      %v760 = vtanh.pop %v718
      %v761 = vtanh.pop %v723
      %v762 = vtanh.pop %v726
      %v763 = vtanh.pop %v731
      %v764 = vtanh.pop %v734
      %v765 = vtanh.pop %v739
      %v766 = vtanh.pop %v742
      %v767 = vtanh.pop %v747
      %v768 = vtanh.pop %v750
      // Predicated region
      $region41: #{gnn_stack_forward.2} parent=35 // pred_check
        %p769 = pneg %p191
      $region42: #{gnn_stack_forward.2} parent=35 // pred_check_branch
        %771 = sbr.rel (%p769) target = $region44
      $region43: #{gnn_stack_forward.2} parent=35 // pred_region
        %s772 = scalar_lea.vmem %s4, %s190
        %773 = vst [vmem:[%s772] sm:$0xff] %v753
        %774 = vst [vmem:[%s772 + $0x8] sm:$0xff] %v754
        %775 = vst [vmem:[%s772 + $0x10] sm:$0xff] %v755
        %776 = vst [vmem:[%s772 + $0x18] sm:$0xff] %v756
        %777 = vst [vmem:[%s772 + $0x20] sm:$0xff] %v757
        %778 = vst [vmem:[%s772 + $0x28] sm:$0xff] %v758
        %779 = vst [vmem:[%s772 + $0x30] sm:$0xff] %v759
        %780 = vst [vmem:[%s772 + $0x38] sm:$0xff] %v760
        %781 = vst [vmem:[%s772 + $0x40] sm:$0xff] %v761
        %782 = vst [vmem:[%s772 + $0x48] sm:$0xff] %v762
        %783 = vst [vmem:[%s772 + $0x50] sm:$0xff] %v763
        %784 = vst [vmem:[%s772 + $0x58] sm:$0xff] %v764
        %785 = vst [vmem:[%s772 + $0x60] sm:$0xff] %v765
        %786 = vst [vmem:[%s772 + $0x68] sm:$0xff] %v766
        %787 = vst [vmem:[%s772 + $0x70] sm:$0xff] %v767
        %788 = vst [vmem:[%s772 + $0x78] sm:$0xff] %v768
      $region44: #{gnn_stack_forward.2} parent=35 // pred_fallthru
        _
      %p789 = scmp.gt.s32.totalorder %s19, 0
      // Predicated region
      $region45: #{gnn_stack_forward.2} parent=35 // pred_check
        %p790 = pneg %p789
      $region46: #{gnn_stack_forward.2} parent=35 // pred_check_branch
        %792 = sbr.rel (%p790) target = $region48
      $region47: #{gnn_stack_forward.2} parent=35 // pred_region
        %s793 = scalar_lea.vmem %s4, %s190
        %v794 = vld [vmem:[%s793] sm:$0xff]
        %v795 = vld [vmem:[%s793 + $0x8] sm:$0xff]
        %v796 = vld [vmem:[%s793 + $0x10] sm:$0xff]
        %v797 = vld [vmem:[%s793 + $0x18] sm:$0xff]
        %v798 = vld [vmem:[%s793 + $0x20] sm:$0xff]
        %v799 = vld [vmem:[%s793 + $0x28] sm:$0xff]
        %v800 = vld [vmem:[%s793 + $0x30] sm:$0xff]
        %v801 = vld [vmem:[%s793 + $0x38] sm:$0xff]
        %v802 = vld [vmem:[%s793 + $0x40] sm:$0xff]
        %v803 = vld [vmem:[%s793 + $0x48] sm:$0xff]
        %v804 = vld [vmem:[%s793 + $0x50] sm:$0xff]
        %v805 = vld [vmem:[%s793 + $0x58] sm:$0xff]
        %v806 = vld [vmem:[%s793 + $0x60] sm:$0xff]
        %v807 = vld [vmem:[%s793 + $0x68] sm:$0xff]
        %v808 = vld [vmem:[%s793 + $0x70] sm:$0xff]
        %v809 = vld [vmem:[%s793 + $0x78] sm:$0xff]
        %v810 = vadd.f32 %v794, %v753
        %v811 = vadd.f32 %v795, %v754
        %v812 = vadd.f32 %v796, %v755
        %v813 = vadd.f32 %v797, %v756
        %v814 = vadd.f32 %v798, %v757
        %v815 = vadd.f32 %v799, %v758
        %v816 = vadd.f32 %v800, %v759
        %v817 = vadd.f32 %v801, %v760
        %v818 = vadd.f32 %v802, %v761
        %v819 = vadd.f32 %v803, %v762
        %v820 = vadd.f32 %v804, %v763
        %v821 = vadd.f32 %v805, %v764
        %v822 = vadd.f32 %v806, %v765
        %v823 = vadd.f32 %v807, %v766
        %v824 = vadd.f32 %v808, %v767
        %v825 = vadd.f32 %v809, %v768
        %826 = vst [vmem:[%s793] sm:$0xff] %v810
        %827 = vst [vmem:[%s793 + $0x8] sm:$0xff] %v811
        %828 = vst [vmem:[%s793 + $0x10] sm:$0xff] %v812
        %829 = vst [vmem:[%s793 + $0x18] sm:$0xff] %v813
        %830 = vst [vmem:[%s793 + $0x20] sm:$0xff] %v814
        %831 = vst [vmem:[%s793 + $0x28] sm:$0xff] %v815
        %832 = vst [vmem:[%s793 + $0x30] sm:$0xff] %v816
        %833 = vst [vmem:[%s793 + $0x38] sm:$0xff] %v817
        %834 = vst [vmem:[%s793 + $0x40] sm:$0xff] %v818
        %835 = vst [vmem:[%s793 + $0x48] sm:$0xff] %v819
        %836 = vst [vmem:[%s793 + $0x50] sm:$0xff] %v820
        %837 = vst [vmem:[%s793 + $0x58] sm:$0xff] %v821
        %838 = vst [vmem:[%s793 + $0x60] sm:$0xff] %v822
        %839 = vst [vmem:[%s793 + $0x68] sm:$0xff] %v823
        %840 = vst [vmem:[%s793 + $0x70] sm:$0xff] %v824
        %841 = vst [vmem:[%s793 + $0x78] sm:$0xff] %v825
      $region48: #{gnn_stack_forward.2} parent=35 // pred_fallthru
        _
      %p842 = scmp.lt.s32.totalorder %s19, 3
      // Predicated region
      $region49: #{gnn_stack_forward.2} parent=35 // pred_check
        %p843 = pneg %p842
      $region50: #{gnn_stack_forward.2} parent=35 // pred_check_branch
        %845 = sbr.rel (%p843) target = $region52
      $region51: #{gnn_stack_forward.2} parent=35 // pred_region
        %v846 = vpack.c.bf16 %v754, %v753
        %v847 = vpack.c.bf16 %v756, %v755
        %v848 = vpack.c.bf16 %v758, %v757
        %v849 = vpack.c.bf16 %v760, %v759
        %v850 = vpack.c.bf16 %v762, %v761
        %v851 = vpack.c.bf16 %v764, %v763
        %v852 = vpack.c.bf16 %v766, %v765
        %v853 = vpack.c.bf16 %v768, %v767
        %s854 = sadd.s32 %s19, 1
        %s855 = smul.u32 %s854, 16
        %s856 = smul.addr %s855, 4
        %s857 = scalar_lea.vmem %s2, %s856
        %v858 = vld [vmem:[%s857] sm:$0xf]
        %v859 = vld [vmem:[%s857 + $0x4] sm:$0xf]
        %v860 = vld [vmem:[%s857 + $0x8] sm:$0xf]
        %v861 = vld [vmem:[%s857 + $0xc] sm:$0xf]
        %v862 = vld [vmem:[%s857 + $0x10] sm:$0xf]
        %v863 = vld [vmem:[%s857 + $0x14] sm:$0xf]
        %v864 = vld [vmem:[%s857 + $0x18] sm:$0xf]
        %v865 = vld [vmem:[%s857 + $0x1c] sm:$0xf]
        %v866 = vld [vmem:[%s857 + $0x20] sm:$0xf]
        %v867 = vld [vmem:[%s857 + $0x24] sm:$0xf]
        %v868 = vld [vmem:[%s857 + $0x28] sm:$0xf]
        %v869 = vld [vmem:[%s857 + $0x2c] sm:$0xf]
        %v870 = vld [vmem:[%s857 + $0x30] sm:$0xf]
        %v871 = vld [vmem:[%s857 + $0x34] sm:$0xf]
        %v872 = vld [vmem:[%s857 + $0x38] sm:$0xf]
        %v873 = vld [vmem:[%s857 + $0x3c] sm:$0xf]
        %v890 = vunpack.c.l.b16 %v858
        %v891 = vunpack.c.l.b16 %v859
        %v892 = vunpack.c.l.b16 %v860
        %v893 = vunpack.c.l.b16 %v861
        %v894 = vunpack.c.l.b16 %v862
        %v895 = vunpack.c.l.b16 %v863
        %v896 = vunpack.c.l.b16 %v864
        %v897 = vunpack.c.l.b16 %v865
        %v898 = vunpack.c.l.b16 %v866
        %v899 = vunpack.c.l.b16 %v867
        %v900 = vunpack.c.l.b16 %v868
        %v901 = vunpack.c.l.b16 %v869
        %v902 = vunpack.c.l.b16 %v870
        %v903 = vunpack.c.l.b16 %v871
        %v904 = vunpack.c.l.b16 %v872
        %v905 = vunpack.c.l.b16 %v873
        %v906 = vpack.c.b16 %v891, %v890
        %v907 = vpack.c.b16 %v893, %v892
        %v908 = vpack.c.b16 %v895, %v894
        %v909 = vpack.c.b16 %v897, %v896
        %v910 = vpack.c.b16 %v899, %v898
        %v911 = vpack.c.b16 %v901, %v900
        %v912 = vpack.c.b16 %v903, %v902
        %v913 = vpack.c.b16 %v905, %v904
        %922 = vmatprep.subr.bf16.mxu0 0
        %923 = vmatpush1.bf16.msra.mxu0 %v913
        %924 = vmatprep.subr.bf16.mxu0 0
        %925 = vmatpush1.bf16.msra.mxu0 %v912
        %926 = vmatprep.subr.bf16.mxu0 0
        %927 = vmatpush1.bf16.msra.mxu0 %v911
        %928 = vmatprep.subr.bf16.mxu0 0
        %929 = vmatpush1.bf16.msra.mxu0 %v910
        %930 = vmatprep.subr.bf16.mxu0 0
        %931 = vmatpush1.bf16.msra.mxu0 %v909
        %932 = vmatprep.subr.bf16.mxu0 0
        %933 = vmatpush1.bf16.msra.mxu0 %v908
        %934 = vmatprep.subr.bf16.mxu0 0
        %935 = vmatpush1.bf16.msra.mxu0 %v907
        %936 = vmatprep.subr.bf16.mxu0 0
        %937 = vmatpush1.bf16.msra.mxu0 %v906
        %938 = vmatprep.subr.bf16.mxu0 0
        %939 = vmatpush2.bf16.msra.mxu0 0
        %940 = vmatprep.subr.bf16.mxu0 0
        %941 = vmatpush2.bf16.msra.mxu0 0
        %942 = vmatprep.subr.bf16.mxu0 0
        %943 = vmatpush2.bf16.msra.mxu0 0
        %944 = vmatprep.subr.bf16.mxu0 0
        %945 = vmatpush2.bf16.msra.mxu0 0
        %946 = vmatprep.subr.bf16.mxu0 0
        %947 = vmatpush2.bf16.msra.mxu0 0
        %948 = vmatprep.subr.bf16.mxu0 0
        %949 = vmatpush2.bf16.msra.mxu0 0
        %950 = vmatprep.subr.bf16.mxu0 0
        %951 = vmatpush2.bf16.msra.mxu0 0
        %952 = vmatprep.subr.bf16.mxu0 0
        %953 = vmatpush2.bf16.msra.mxu0 0
        %954 = vmatprep.mubr.bf16.mxu0 0
        %955 = vmatmul.mubr.bf16.gmra.mxu0 %v846
        %v956 = vpop.f32.mrf.mxu0
        %v957 = vadd.f32 0.0, %v956
        %v958 = vpop.f32.mrf.mxu0
        %v959 = vpop.f32.mrf.mxu0
        %v960 = vadd.f32 0.0, %v959
        %v961 = vpop.f32.mrf.mxu0
        %962 = vmatprep.mubr.bf16.mxu0 0
        %963 = vmatmul.mubr.bf16.gmra.mxu0 %v847
        %v964 = vpop.f32.mrf.mxu0
        %v965 = vadd.f32 0.0, %v964
        %v966 = vpop.f32.mrf.mxu0
        %v967 = vpop.f32.mrf.mxu0
        %v968 = vadd.f32 0.0, %v967
        %v969 = vpop.f32.mrf.mxu0
        %970 = vmatprep.mubr.bf16.mxu0 0
        %971 = vmatmul.mubr.bf16.gmra.mxu0 %v848
        %v972 = vpop.f32.mrf.mxu0
        %v973 = vadd.f32 0.0, %v972
        %v974 = vpop.f32.mrf.mxu0
        %v975 = vpop.f32.mrf.mxu0
        %v976 = vadd.f32 0.0, %v975
        %v977 = vpop.f32.mrf.mxu0
        %978 = vmatprep.mubr.bf16.mxu0 0
        %979 = vmatmul.mubr.bf16.gmra.mxu0 %v849
        %v980 = vpop.f32.mrf.mxu0
        %v981 = vadd.f32 0.0, %v980
        %v982 = vpop.f32.mrf.mxu0
        %v983 = vpop.f32.mrf.mxu0
        %v984 = vadd.f32 0.0, %v983
        %v985 = vpop.f32.mrf.mxu0
        %986 = vmatprep.mubr.bf16.mxu0 0
        %987 = vmatmul.mubr.bf16.gmra.mxu0 %v850
        %v988 = vpop.f32.mrf.mxu0
        %v989 = vadd.f32 0.0, %v988
        %v990 = vpop.f32.mrf.mxu0
        %v991 = vpop.f32.mrf.mxu0
        %v992 = vadd.f32 0.0, %v991
        %v993 = vpop.f32.mrf.mxu0
        %994 = vmatprep.mubr.bf16.mxu0 0
        %995 = vmatmul.mubr.bf16.gmra.mxu0 %v851
        %v996 = vpop.f32.mrf.mxu0
        %v997 = vadd.f32 0.0, %v996
        %v998 = vpop.f32.mrf.mxu0
        %v999 = vpop.f32.mrf.mxu0
        %v1000 = vadd.f32 0.0, %v999
        %v1001 = vpop.f32.mrf.mxu0
        %1002 = vmatprep.mubr.bf16.mxu0 0
        %1003 = vmatmul.mubr.bf16.gmra.mxu0 %v852
        %v1004 = vpop.f32.mrf.mxu0
        %v1005 = vadd.f32 0.0, %v1004
        %v1006 = vpop.f32.mrf.mxu0
        %v1007 = vpop.f32.mrf.mxu0
        %v1008 = vadd.f32 0.0, %v1007
        %v1009 = vpop.f32.mrf.mxu0
        %1010 = vmatprep.mubr.bf16.mxu0 0
        %1011 = vmatmul.mubr.bf16.gmra.mxu0 %v853
        %v1012 = vpop.f32.mrf.mxu0
        %v1013 = vadd.f32 0.0, %v1012
        %v1014 = vpop.f32.mrf.mxu0
        %v1015 = vpop.f32.mrf.mxu0
        %v1016 = vadd.f32 0.0, %v1015
        %v1017 = vpop.f32.mrf.mxu0
        %1018 = vdwg.mxu0
        %v1019 = vpack.c.bf16 %v960, %v957
        %v1020 = vpack.c.bf16 %v968, %v965
        %v1021 = vpack.c.bf16 %v976, %v973
        %v1022 = vpack.c.bf16 %v984, %v981
        %v1023 = vpack.c.bf16 %v992, %v989
        %v1024 = vpack.c.bf16 %v1000, %v997
        %v1025 = vpack.c.bf16 %v1008, %v1005
        %v1026 = vpack.c.bf16 %v1016, %v1013
        %p1027 = scmp.eq.s32.totalorder %s533, 0
        // Predicated region
        $region53: #{gnn_stack_forward.2} parent=51 // pred_check
          %p1028 = pneg %p1027
        $region54: #{gnn_stack_forward.2} parent=51 // pred_check_branch
          %1030 = sbr.rel (%p1028) target = $region56
        $region55: #{gnn_stack_forward.2} parent=51 // pred_region
          %v1039 = vunpack.c.l.b16 %v1019
          %v1040 = vunpack.c.h.b16 %v1019
          %v1041 = vunpack.c.l.b16 %v1020
          %v1042 = vunpack.c.h.b16 %v1020
          %v1043 = vunpack.c.l.b16 %v1021
          %v1044 = vunpack.c.h.b16 %v1021
          %v1045 = vunpack.c.l.b16 %v1022
          %v1046 = vunpack.c.h.b16 %v1022
          %v1047 = vunpack.c.l.b16 %v1023
          %v1048 = vunpack.c.h.b16 %v1023
          %v1049 = vunpack.c.l.b16 %v1024
          %v1050 = vunpack.c.h.b16 %v1024
          %v1051 = vunpack.c.l.b16 %v1025
          %v1052 = vunpack.c.h.b16 %v1025
          %v1053 = vunpack.c.l.b16 %v1026
          %v1054 = vunpack.c.h.b16 %v1026
          %v1055 = vpack.c.b16 %v1039, %v1039
          %v1056 = vpack.c.b16 %v1040, %v1040
          %v1057 = vpack.c.b16 %v1041, %v1041
          %v1058 = vpack.c.b16 %v1042, %v1042
          %v1059 = vpack.c.b16 %v1043, %v1043
          %v1060 = vpack.c.b16 %v1044, %v1044
          %v1061 = vpack.c.b16 %v1045, %v1045
          %v1062 = vpack.c.b16 %v1046, %v1046
          %v1063 = vpack.c.b16 %v1047, %v1047
          %v1064 = vpack.c.b16 %v1048, %v1048
          %v1065 = vpack.c.b16 %v1049, %v1049
          %v1066 = vpack.c.b16 %v1050, %v1050
          %v1067 = vpack.c.b16 %v1051, %v1051
          %v1068 = vpack.c.b16 %v1052, %v1052
          %v1069 = vpack.c.b16 %v1053, %v1053
          %v1070 = vpack.c.b16 %v1054, %v1054
          %s1087 = sadd.s32 %s502, 16
          %s1088 = smul.addr %s1087, 4
          %s1089 = scalar_lea.vmem [#allocation2], %s1088
          %1090 = vst [vmem:[%s1089] sm:$0xf] %v1055
          %1091 = vst [vmem:[%s1089 + $0x4] sm:$0xf] %v1056
          %1092 = vst [vmem:[%s1089 + $0x8] sm:$0xf] %v1057
          %1093 = vst [vmem:[%s1089 + $0xc] sm:$0xf] %v1058
          %1094 = vst [vmem:[%s1089 + $0x10] sm:$0xf] %v1059
          %1095 = vst [vmem:[%s1089 + $0x14] sm:$0xf] %v1060
          %1096 = vst [vmem:[%s1089 + $0x18] sm:$0xf] %v1061
          %1097 = vst [vmem:[%s1089 + $0x1c] sm:$0xf] %v1062
          %1098 = vst [vmem:[%s1089 + $0x20] sm:$0xf] %v1063
          %1099 = vst [vmem:[%s1089 + $0x24] sm:$0xf] %v1064
          %1100 = vst [vmem:[%s1089 + $0x28] sm:$0xf] %v1065
          %1101 = vst [vmem:[%s1089 + $0x2c] sm:$0xf] %v1066
          %1102 = vst [vmem:[%s1089 + $0x30] sm:$0xf] %v1067
          %1103 = vst [vmem:[%s1089 + $0x34] sm:$0xf] %v1068
          %1104 = vst [vmem:[%s1089 + $0x38] sm:$0xf] %v1069
          %1105 = vst [vmem:[%s1089 + $0x3c] sm:$0xf] %v1070
        $region56: #{gnn_stack_forward.2} parent=51 // pred_fallthru
          _
        %p1106 = scmp.eq.s32.totalorder %s533, 1
        // Predicated region
        $region57: #{gnn_stack_forward.2} parent=51 // pred_check
          %p1107 = pneg %p1106
        $region58: #{gnn_stack_forward.2} parent=51 // pred_check_branch
          %1109 = sbr.rel (%p1107) target = $region60
        $region59: #{gnn_stack_forward.2} parent=51 // pred_region
          %v1118 = vunpack.c.l.b16 %v1019
          %v1119 = vunpack.c.h.b16 %v1019
          %v1120 = vunpack.c.l.b16 %v1020
          %v1121 = vunpack.c.h.b16 %v1020
          %v1122 = vunpack.c.l.b16 %v1021
          %v1123 = vunpack.c.h.b16 %v1021
          %v1124 = vunpack.c.l.b16 %v1022
          %v1125 = vunpack.c.h.b16 %v1022
          %v1126 = vunpack.c.l.b16 %v1023
          %v1127 = vunpack.c.h.b16 %v1023
          %v1128 = vunpack.c.l.b16 %v1024
          %v1129 = vunpack.c.h.b16 %v1024
          %v1130 = vunpack.c.l.b16 %v1025
          %v1131 = vunpack.c.h.b16 %v1025
          %v1132 = vunpack.c.l.b16 %v1026
          %v1133 = vunpack.c.h.b16 %v1026
          %v1134 = vpack.c.b16 %v1118, %v1118
          %v1135 = vpack.c.b16 %v1119, %v1119
          %v1136 = vpack.c.b16 %v1120, %v1120
          %v1137 = vpack.c.b16 %v1121, %v1121
          %v1138 = vpack.c.b16 %v1122, %v1122
          %v1139 = vpack.c.b16 %v1123, %v1123
          %v1140 = vpack.c.b16 %v1124, %v1124
          %v1141 = vpack.c.b16 %v1125, %v1125
          %v1142 = vpack.c.b16 %v1126, %v1126
          %v1143 = vpack.c.b16 %v1127, %v1127
          %v1144 = vpack.c.b16 %v1128, %v1128
          %v1145 = vpack.c.b16 %v1129, %v1129
          %v1146 = vpack.c.b16 %v1130, %v1130
          %v1147 = vpack.c.b16 %v1131, %v1131
          %v1148 = vpack.c.b16 %v1132, %v1132
          %v1149 = vpack.c.b16 %v1133, %v1133
          %s1166 = smul.addr %s502, 4
          %s1167 = scalar_lea.vmem [#allocation2], %s1166
          %1168 = vst [vmem:[%s1167] sm:$0xf] %v1134
          %1169 = vst [vmem:[%s1167 + $0x4] sm:$0xf] %v1135
          %1170 = vst [vmem:[%s1167 + $0x8] sm:$0xf] %v1136
          %1171 = vst [vmem:[%s1167 + $0xc] sm:$0xf] %v1137
          %1172 = vst [vmem:[%s1167 + $0x10] sm:$0xf] %v1138
          %1173 = vst [vmem:[%s1167 + $0x14] sm:$0xf] %v1139
          %1174 = vst [vmem:[%s1167 + $0x18] sm:$0xf] %v1140
          %1175 = vst [vmem:[%s1167 + $0x1c] sm:$0xf] %v1141
          %1176 = vst [vmem:[%s1167 + $0x20] sm:$0xf] %v1142
          %1177 = vst [vmem:[%s1167 + $0x24] sm:$0xf] %v1143
          %1178 = vst [vmem:[%s1167 + $0x28] sm:$0xf] %v1144
          %1179 = vst [vmem:[%s1167 + $0x2c] sm:$0xf] %v1145
          %1180 = vst [vmem:[%s1167 + $0x30] sm:$0xf] %v1146
          %1181 = vst [vmem:[%s1167 + $0x34] sm:$0xf] %v1147
          %1182 = vst [vmem:[%s1167 + $0x38] sm:$0xf] %v1148
          %1183 = vst [vmem:[%s1167 + $0x3c] sm:$0xf] %v1149
        $region60: #{gnn_stack_forward.2} parent=51 // pred_fallthru
          _
      $region52: #{gnn_stack_forward.2} parent=35 // pred_fallthru
        _
      // Predicated region
      $region61: #{gnn_stack_forward.2} parent=35 // pred_check
        %p1184 = pneg %p129
      $region62: #{gnn_stack_forward.2} parent=35 // pred_check_branch
        %1186 = sbr.rel (%p1184) target = $region64
      $region63: #{gnn_stack_forward.2} parent=35 // pred_region
        _
      $region64: #{gnn_stack_forward.2} parent=35 // pred_fallthru
        _
      // Predicated region
      $region65: #{gnn_stack_forward.2} parent=35 // pred_check
        %p1187 = pneg %p129
      $region66: #{gnn_stack_forward.2} parent=35 // pred_check_branch
        %1189 = sbr.rel (%p1187) target = $region68
      $region67: #{gnn_stack_forward.2} parent=35 // pred_region
        _
      $region68: #{gnn_stack_forward.2} parent=35 // pred_fallthru
        _
    $region36: #{gnn_stack_forward.2} parent=5 // pred_fallthru
      _
    %p1190 = scmp.le.s32.totalorder 2, %s10
    // Predicated region
    $region69: #{gnn_stack_forward.2} parent=5 // pred_check
      %p1191 = pneg %p1190
    $region70: #{gnn_stack_forward.2} parent=5 // pred_check_branch
      %1193 = sbr.rel (%p1191) target = $region72
    $region71: #{gnn_stack_forward.2} parent=5 // pred_region
      %s1194 = ssub.s32 %s10, 2
    $region72: #{gnn_stack_forward.2} parent=5 // pred_fallthru
      _
  $region6: #{gnn_stack_forward.2} parent=0 // loop_footer
    %s14 = sadd.s32 1, %s10
  $region7: #{gnn_stack_forward.2} parent=0 // loop_footer_branch
    %9 = sbr.rel target = $region3
  $region8: #{gnn_stack_forward.2} parent=0 // loop_exit
    _

// kernel: gnn_stack_forward.3
$region0: #{gnn_stack_forward.3}
  #allocation0 [shape = 'u32[]', space=smem, size = 0x4, offset = 0x4, fixed_abs, tag = 'smem constant byte address 0x4 - core index']
  #allocation1 [shape = 'u32[144,128]{1,0:T(1,128)}', space=vmem, size = 0x12000, scoped, tag = 'internal scratch']
  %s0 = inlined_call_operand.vmem [shape: bf16[32,128], index: 0, kind: input, shape index: {}]
  %s1 = inlined_call_operand.vmem [shape: bf16[32,128], index: 1, kind: input, shape index: {}]
  %s2 = inlined_call_operand.vmem [shape: bf16[128,16], index: 2, kind: input, shape index: {}]
  %s3 = inlined_call_operand.vmem [shape: f32[1,16], index: 3, kind: input, shape index: {}]
  %s4 = inlined_call_operand.vmem [shape: bf16[80,32], index: 4, kind: input, shape index: {}]
  %s5 = inlined_call_operand.vmem [shape: f32[1,32], index: 5, kind: input, shape index: {}]
  %s6 = inlined_call_operand.vmem [shape: bf16[352,128], index: 6, kind: input, shape index: {}]
  %s7 = inlined_call_operand.vmem [shape: f32[1,128], index: 7, kind: input, shape index: {}]
  %s8 = inlined_call_operand.vmem [shape: bf16[128,128], index: 8, kind: input, shape index: {}]
  %s9 = inlined_call_operand.vmem [shape: f32[1,128], index: 9, kind: input, shape index: {}]
  %s10 = inlined_call_operand.hbm [shape: f32[2,128], index: 10, kind: output, shape index: {0}]
  %s11 = inlined_call_operand.hbm [shape: f32[2,128], index: 11, kind: output, shape index: {1}]
  %12 = xla_tuple %s10, %s11
  %s13 = sld [smem:[#allocation0]]
  $region58: #{gnn_stack_forward.3} parent=0
    _
  %s15 = ssub.s32 1, %s13
  %s16 = scalar_select 0, %s15, %s13
  $region1: #{gnn_stack_forward.3} parent=0
    #allocation2 [shape = 'u8[1024]{0}', space=vmem, size = 0x400, scoped, tag = 'output window, operand 0, single buffered']
    #allocation3 [shape = 's32[1]{0}', space=sflag, size = 0x4, scoped, tag = 'scoped memory for gnn_stack_forward.3']
    #allocation4 [shape = 'u8[1024]{0}', space=vmem, size = 0x400, scoped, tag = 'output window, operand 1, single buffered']
    #allocation5 [shape = 's32[1]{0}', space=sflag, size = 0x4, scoped, tag = 'scoped memory for gnn_stack_forward.3']
    %17 = vsyncpa [#allocation3], 0
    %18 = vsyncpa [#allocation5], 0
    // Predicated region
    $region2: #{gnn_stack_forward.3} parent=1 // pred_check
      _
    $region3: #{gnn_stack_forward.3} parent=1 // pred_check_branch
      %20 = sbr.rel (0) target = $region5
    $region4: #{gnn_stack_forward.3} parent=1 // pred_region
      _
    $region5: #{gnn_stack_forward.3} parent=1 // pred_fallthru
      _
    // Predicated region
    $region6: #{gnn_stack_forward.3} parent=1 // pred_check
      _
    $region7: #{gnn_stack_forward.3} parent=1 // pred_check_branch
      %22 = sbr.rel (0) target = $region9
    $region8: #{gnn_stack_forward.3} parent=1 // pred_region
      _
    $region9: #{gnn_stack_forward.3} parent=1 // pred_fallthru
      _
    // Predicated region
    $region10: #{gnn_stack_forward.3} parent=1 // pred_check
      _
    $region11: #{gnn_stack_forward.3} parent=1 // pred_check_branch
      %24 = sbr.rel (0) target = $region13
    $region12: #{gnn_stack_forward.3} parent=1 // pred_region
      _
    $region13: #{gnn_stack_forward.3} parent=1 // pred_fallthru
      _
    // Predicated region
    $region14: #{gnn_stack_forward.3} parent=1 // pred_check
      _
    $region15: #{gnn_stack_forward.3} parent=1 // pred_check_branch
      %26 = sbr.rel (0) target = $region17
    $region16: #{gnn_stack_forward.3} parent=1 // pred_region
      _
    $region17: #{gnn_stack_forward.3} parent=1 // pred_fallthru
      _
    // Predicated region
    $region18: #{gnn_stack_forward.3} parent=1 // pred_check
      _
    $region19: #{gnn_stack_forward.3} parent=1 // pred_check_branch
      %28 = sbr.rel (0) target = $region21
    $region20: #{gnn_stack_forward.3} parent=1 // pred_region
      _
    $region21: #{gnn_stack_forward.3} parent=1 // pred_fallthru
      _
    // Predicated region
    $region22: #{gnn_stack_forward.3} parent=1 // pred_check
      _
    $region23: #{gnn_stack_forward.3} parent=1 // pred_check_branch
      %30 = sbr.rel (0) target = $region25
    $region24: #{gnn_stack_forward.3} parent=1 // pred_region
      _
    $region25: #{gnn_stack_forward.3} parent=1 // pred_fallthru
      _
    // Predicated region
    $region26: #{gnn_stack_forward.3} parent=1 // pred_check
      _
    $region27: #{gnn_stack_forward.3} parent=1 // pred_check_branch
      %32 = sbr.rel (0) target = $region29
    $region28: #{gnn_stack_forward.3} parent=1 // pred_region
      _
    $region29: #{gnn_stack_forward.3} parent=1 // pred_fallthru
      _
    // Predicated region
    $region30: #{gnn_stack_forward.3} parent=1 // pred_check
      _
    $region31: #{gnn_stack_forward.3} parent=1 // pred_check_branch
      %34 = sbr.rel (0) target = $region33
    $region32: #{gnn_stack_forward.3} parent=1 // pred_region
      _
    $region33: #{gnn_stack_forward.3} parent=1 // pred_fallthru
      _
    // Predicated region
    $region34: #{gnn_stack_forward.3} parent=1 // pred_check
      _
    $region35: #{gnn_stack_forward.3} parent=1 // pred_check_branch
      %36 = sbr.rel (0) target = $region37
    $region36: #{gnn_stack_forward.3} parent=1 // pred_region
      _
    $region37: #{gnn_stack_forward.3} parent=1 // pred_fallthru
      _
    // Predicated region
    $region38: #{gnn_stack_forward.3} parent=1 // pred_check
      _
    $region39: #{gnn_stack_forward.3} parent=1 // pred_check_branch
      %38 = sbr.rel (0) target = $region41
    $region40: #{gnn_stack_forward.3} parent=1 // pred_region
      _
    $region41: #{gnn_stack_forward.3} parent=1 // pred_fallthru
      _
    %v40 = vld [vmem:[%s2] sm:$0xf]
    %v41 = vld [vmem:[%s2 + $0x4] sm:$0xf]
    %v42 = vld [vmem:[%s2 + $0x8] sm:$0xf]
    %v43 = vld [vmem:[%s2 + $0xc] sm:$0xf]
    %v44 = vld [vmem:[%s2 + $0x10] sm:$0xf]
    %v45 = vld [vmem:[%s2 + $0x14] sm:$0xf]
    %v46 = vld [vmem:[%s2 + $0x18] sm:$0xf]
    %v47 = vld [vmem:[%s2 + $0x1c] sm:$0xf]
    %v48 = vld [vmem:[%s2 + $0x20] sm:$0xf]
    %v49 = vld [vmem:[%s2 + $0x24] sm:$0xf]
    %v50 = vld [vmem:[%s2 + $0x28] sm:$0xf]
    %v51 = vld [vmem:[%s2 + $0x2c] sm:$0xf]
    %v52 = vld [vmem:[%s2 + $0x30] sm:$0xf]
    %v53 = vld [vmem:[%s2 + $0x34] sm:$0xf]
    %v54 = vld [vmem:[%s2 + $0x38] sm:$0xf]
    %v55 = vld [vmem:[%s2 + $0x3c] sm:$0xf]
    %v56 = vld [vmem:[%s3] sm:$0x1]
    %v57 = vld [vmem:[%s0] sm:$0xf]
    %v58 = vld [vmem:[%s0 + $0x4] sm:$0xf]
    %v59 = vld [vmem:[%s0 + $0x8] sm:$0xf]
    %v60 = vld [vmem:[%s0 + $0xc] sm:$0xf]
    %v62 = vlaneseq
    %v63 = vshrl.u32 %v62, 7
    %v64 = vsub.s32 0, %v63
    %v65 = vrot.slane %v56, %v64
    %v71 = vunpack.c.l.b16 %v57
    %v72 = vunpack.c.l.b16 %v58
    %v73 = vunpack.c.l.b16 %v59
    %v74 = vunpack.c.l.b16 %v60
    %v75 = vpack.c.b16 %v72, %v71
    %v76 = vpack.c.b16 %v74, %v73
    %v95 = vunpack.c.l.b16 %v40
    %v96 = vunpack.c.l.b16 %v41
    %v97 = vunpack.c.l.b16 %v42
    %v98 = vunpack.c.l.b16 %v43
    %v99 = vunpack.c.l.b16 %v44
    %v100 = vunpack.c.l.b16 %v45
    %v101 = vunpack.c.l.b16 %v46
    %v102 = vunpack.c.l.b16 %v47
    %v103 = vunpack.c.l.b16 %v48
    %v104 = vunpack.c.l.b16 %v49
    %v105 = vunpack.c.l.b16 %v50
    %v106 = vunpack.c.l.b16 %v51
    %v107 = vunpack.c.l.b16 %v52
    %v108 = vunpack.c.l.b16 %v53
    %v109 = vunpack.c.l.b16 %v54
    %v110 = vunpack.c.l.b16 %v55
    %v111 = vpack.c.b16 %v96, %v95
    %v112 = vpack.c.b16 %v98, %v97
    %v113 = vpack.c.b16 %v100, %v99
    %v114 = vpack.c.b16 %v102, %v101
    %v115 = vpack.c.b16 %v104, %v103
    %v116 = vpack.c.b16 %v106, %v105
    %v117 = vpack.c.b16 %v108, %v107
    %v118 = vpack.c.b16 %v110, %v109
    %127 = vmatprep.subr.bf16.mxu0 0
    %128 = vmatpush1.bf16.msra.mxu0 %v118
    %129 = vmatprep.subr.bf16.mxu0 0
    %130 = vmatpush1.bf16.msra.mxu0 %v117
    %131 = vmatprep.subr.bf16.mxu0 0
    %132 = vmatpush1.bf16.msra.mxu0 %v116
    %133 = vmatprep.subr.bf16.mxu0 0
    %134 = vmatpush1.bf16.msra.mxu0 %v115
    %135 = vmatprep.subr.bf16.mxu0 0
    %136 = vmatpush1.bf16.msra.mxu0 %v114
    %137 = vmatprep.subr.bf16.mxu0 0
    %138 = vmatpush1.bf16.msra.mxu0 %v113
    %139 = vmatprep.subr.bf16.mxu0 0
    %140 = vmatpush1.bf16.msra.mxu0 %v112
    %141 = vmatprep.subr.bf16.mxu0 0
    %142 = vmatpush1.bf16.msra.mxu0 %v111
    %143 = vmatprep.subr.bf16.mxu0 0
    %144 = vmatpush2.bf16.msra.mxu0 0
    %145 = vmatprep.subr.bf16.mxu0 0
    %146 = vmatpush2.bf16.msra.mxu0 0
    %147 = vmatprep.subr.bf16.mxu0 0
    %148 = vmatpush2.bf16.msra.mxu0 0
    %149 = vmatprep.subr.bf16.mxu0 0
    %150 = vmatpush2.bf16.msra.mxu0 0
    %151 = vmatprep.subr.bf16.mxu0 0
    %152 = vmatpush2.bf16.msra.mxu0 0
    %153 = vmatprep.subr.bf16.mxu0 0
    %154 = vmatpush2.bf16.msra.mxu0 0
    %155 = vmatprep.subr.bf16.mxu0 0
    %156 = vmatpush2.bf16.msra.mxu0 0
    %157 = vmatprep.subr.bf16.mxu0 0
    %158 = vmatpush2.bf16.msra.mxu0 0
    %159 = vmatprep.mubr.bf16.mxu0 0
    %160 = vmatmul.mubr.bf16.gmra.mxu0 %v75
    %v161 = vpop.f32.mrf.mxu0
    %v162 = vadd.f32 %v65, %v161
    %v163 = vpop.f32.mrf.mxu0
    %v164 = vpop.f32.mrf.mxu0
    %v165 = vadd.f32 %v65, %v164
    %v166 = vpop.f32.mrf.mxu0
    %167 = vmatprep.mubr.bf16.mxu0 0
    %168 = vmatmul.mubr.bf16.gmra.mxu0 %v76
    %v169 = vpop.f32.mrf.mxu0
    %v170 = vadd.f32 %v65, %v169
    %v171 = vpop.f32.mrf.mxu0
    %v172 = vpop.f32.mrf.mxu0
    %v173 = vadd.f32 %v65, %v172
    %v174 = vpop.f32.mrf.mxu0
    %175 = vdwg.mxu0
    %v176 = vmax.f32 %v162, 0.0
    %v177 = vmax.f32 %v165, 0.0
    %v178 = vmax.f32 %v170, 0.0
    %v179 = vmax.f32 %v173, 0.0
    %v180 = vld [vmem:[%s1] sm:$0xf]
    %v181 = vld [vmem:[%s1 + $0x4] sm:$0xf]
    %v182 = vld [vmem:[%s1 + $0x8] sm:$0xf]
    %v183 = vld [vmem:[%s1 + $0xc] sm:$0xf]
    %v188 = vunpack.c.l.b16 %v180
    %v189 = vunpack.c.l.b16 %v181
    %v190 = vunpack.c.l.b16 %v182
    %v191 = vunpack.c.l.b16 %v183
    %v192 = vpack.c.b16 %v189, %v188
    %v193 = vpack.c.b16 %v191, %v190
    %196 = vmatprep.subr.bf16.mxu0 0
    %197 = vmatpush1.bf16.msra.mxu0 %v118
    %198 = vmatprep.subr.bf16.mxu0 0
    %199 = vmatpush1.bf16.msra.mxu0 %v117
    %200 = vmatprep.subr.bf16.mxu0 0
    %201 = vmatpush1.bf16.msra.mxu0 %v116
    %202 = vmatprep.subr.bf16.mxu0 0
    %203 = vmatpush1.bf16.msra.mxu0 %v115
    %204 = vmatprep.subr.bf16.mxu0 0
    %205 = vmatpush1.bf16.msra.mxu0 %v114
    %206 = vmatprep.subr.bf16.mxu0 0
    %207 = vmatpush1.bf16.msra.mxu0 %v113
    %208 = vmatprep.subr.bf16.mxu0 0
    %209 = vmatpush1.bf16.msra.mxu0 %v112
    %210 = vmatprep.subr.bf16.mxu0 0
    %211 = vmatpush1.bf16.msra.mxu0 %v111
    %212 = vmatprep.subr.bf16.mxu0 0
    %213 = vmatpush2.bf16.msra.mxu0 0
    %214 = vmatprep.subr.bf16.mxu0 0
    %215 = vmatpush2.bf16.msra.mxu0 0
    %216 = vmatprep.subr.bf16.mxu0 0
    %217 = vmatpush2.bf16.msra.mxu0 0
    %218 = vmatprep.subr.bf16.mxu0 0
    %219 = vmatpush2.bf16.msra.mxu0 0
    %220 = vmatprep.subr.bf16.mxu0 0
    %221 = vmatpush2.bf16.msra.mxu0 0
    %222 = vmatprep.subr.bf16.mxu0 0
    %223 = vmatpush2.bf16.msra.mxu0 0
    %224 = vmatprep.subr.bf16.mxu0 0
    %225 = vmatpush2.bf16.msra.mxu0 0
    %226 = vmatprep.subr.bf16.mxu0 0
    %227 = vmatpush2.bf16.msra.mxu0 0
    %228 = vmatprep.mubr.bf16.mxu0 0
    %229 = vmatmul.mubr.bf16.gmra.mxu0 %v192
    %v230 = vpop.f32.mrf.mxu0
    %v231 = vadd.f32 %v65, %v230
    %v232 = vpop.f32.mrf.mxu0
    %v233 = vpop.f32.mrf.mxu0
    %v234 = vadd.f32 %v65, %v233
    %v235 = vpop.f32.mrf.mxu0
    %236 = vmatprep.mubr.bf16.mxu0 0
    %237 = vmatmul.mubr.bf16.gmra.mxu0 %v193
    %v238 = vpop.f32.mrf.mxu0
    %v239 = vadd.f32 %v65, %v238
    %v240 = vpop.f32.mrf.mxu0
    %v241 = vpop.f32.mrf.mxu0
    %v242 = vadd.f32 %v65, %v241
    %v243 = vpop.f32.mrf.mxu0
    %244 = vdwg.mxu0
    %v245 = vmax.f32 %v231, 0.0
    %v246 = vmax.f32 %v234, 0.0
    %v247 = vmax.f32 %v239, 0.0
    %v248 = vmax.f32 %v242, 0.0
    %v249 = vmax.f32 %v176, %v245
    %v250 = vmax.f32 %v177, %v246
    %v251 = vmax.f32 %v178, %v247
    %v252 = vmax.f32 %v179, %v248
    %vm256 = vcmask 1045504
    %v257 = vrot.slane %v249, 2
    %v258 = vrot.slane %v250, 2
    %v259 = vsel %vm256, %v257, %v258
    %v260 = vrot.slane %v251, 2
    %v261 = vsel %vm256, %v258, %v260
    %262 = vrot.lane.b32.xlu0 %v259, 16
    %v263 = vpop.permute.xlu0 %262
    %264 = vrot.lane.b32.xlu0 %v261, 16
    %v265 = vpop.permute.xlu0 %264
    %266 = vrot.lane.b32.xlu0 %v260, 16
    %v267 = vpop.permute.xlu0 %266
    %vm272 = vcmask 1043456
    %v273 = vrot.slane %v249, 4
    %v274 = vrot.slane %v250, 4
    %v275 = vsel %vm272, %v273, %v274
    %v276 = vrot.slane %v251, 4
    %v277 = vsel %vm272, %v274, %v276
    %v278 = vrot.slane %v252, 4
    %v279 = vsel %vm272, %v276, %v278
    %280 = vrot.lane.b32.xlu0 %v275, 32
    %v281 = vpop.permute.xlu0 %280
    %282 = vrot.lane.b32.xlu0 %v277, 32
    %v283 = vpop.permute.xlu0 %282
    %284 = vrot.lane.b32.xlu0 %v279, 32
    %v285 = vpop.permute.xlu0 %284
    %vm289 = vcmask 1041408
    %v290 = vrot.slane %v249, 6
    %v291 = vrot.slane %v250, 6
    %v292 = vsel %vm289, %v290, %v291
    %v293 = vrot.slane %v251, 6
    %v294 = vsel %vm289, %v291, %v293
    %v295 = vrot.slane %v252, 6
    %v296 = vsel %vm289, %v293, %v295
    %297 = vrot.lane.b32.xlu0 %v292, 48
    %v298 = vpop.permute.xlu0 %297
    %299 = vrot.lane.b32.xlu0 %v294, 48
    %v300 = vpop.permute.xlu0 %299
    %301 = vrot.lane.b32.xlu0 %v296, 48
    %v302 = vpop.permute.xlu0 %301
    %306 = vrot.lane.b32.xlu0 %v250, 64
    %v307 = vpop.permute.xlu0 %306
    %308 = vrot.lane.b32.xlu0 %v251, 64
    %v309 = vpop.permute.xlu0 %308
    %310 = vrot.lane.b32.xlu0 %v252, 64
    %v311 = vpop.permute.xlu0 %310
    %vm315 = vcmask 130048
    %v316 = vsel %vm315, %v249, %v263
    %v317 = vsel %vm315, %v250, %v265
    %v318 = vsel %vm315, %v251, %v267
    %vm319 = vcmask 261120
    %v320 = vsel %vm319, %v316, %v281
    %v321 = vsel %vm319, %v317, %v283
    %v322 = vsel %vm319, %v318, %v285
    %vm323 = vcmask 392192
    %v324 = vsel %vm323, %v320, %v298
    %v325 = vsel %vm323, %v321, %v300
    %v326 = vsel %vm323, %v322, %v302
    %vm327 = vcmask 523264
    %v328 = vsel %vm327, %v324, %v307
    %v329 = vsel %vm327, %v325, %v309
    %v330 = vsel %vm327, %v326, %v311
    %v331 = vpack.c.bf16 %v329, %v328
    %v332 = vpack.c.bf16 %v330, %v330
    %v333 = vld [vmem:[%s4] sm:$0xf]
    %v334 = vld [vmem:[%s4 + $0x4] sm:$0xf]
    %v335 = vld [vmem:[%s4 + $0x8] sm:$0xf]
    %v336 = vld [vmem:[%s4 + $0xc] sm:$0xf]
    %v337 = vld [vmem:[%s4 + $0x10] sm:$0xf]
    %v338 = vld [vmem:[%s4 + $0x14] sm:$0xf]
    %v339 = vld [vmem:[%s4 + $0x18] sm:$0xf]
    %v340 = vld [vmem:[%s4 + $0x1c] sm:$0xf]
    %v341 = vld [vmem:[%s4 + $0x20] sm:$0xf]
    %v342 = vld [vmem:[%s4 + $0x24] sm:$0xf]
    %v343 = vld [vmem:[%s5] sm:$0x1]
    %v345 = vlaneseq
    %v346 = vshrl.u32 %v345, 7
    %v347 = vsub.s32 0, %v346
    %v348 = vrot.slane %v343, %v347
    %v360 = vunpack.c.l.b16 %v333
    %v361 = vunpack.c.l.b16 %v334
    %v362 = vunpack.c.l.b16 %v335
    %v363 = vunpack.c.l.b16 %v336
    %v364 = vunpack.c.l.b16 %v337
    %v365 = vunpack.c.l.b16 %v338
    %v366 = vunpack.c.l.b16 %v339
    %v367 = vunpack.c.l.b16 %v340
    %v368 = vunpack.c.l.b16 %v341
    %v369 = vunpack.c.l.b16 %v342
    %v370 = vpack.c.b16 %v361, %v360
    %v371 = vpack.c.b16 %v363, %v362
    %v372 = vpack.c.b16 %v365, %v364
    %v373 = vpack.c.b16 %v367, %v366
    %v374 = vpack.c.b16 %v369, %v368
    %vm380 = vcmask 654336
    %v382 = vsel %vm380, %v331, 0
    %v385 = vsel %vm380, %v332, 0
    %387 = vmatprep.subr.bf16.mxu0 0
    %388 = vmatpush1.bf16.msra.mxu0 0
    %389 = vmatprep.subr.bf16.mxu0 0
    %390 = vmatpush1.bf16.msra.mxu0 0
    %391 = vmatprep.subr.bf16.mxu0 0
    %392 = vmatpush1.bf16.msra.mxu0 0
    %393 = vmatprep.subr.bf16.mxu0 0
    %394 = vmatpush1.bf16.msra.mxu0 %v374
    %395 = vmatprep.subr.bf16.mxu0 0
    %396 = vmatpush1.bf16.msra.mxu0 %v373
    %397 = vmatprep.subr.bf16.mxu0 0
    %398 = vmatpush1.bf16.msra.mxu0 %v372
    %399 = vmatprep.subr.bf16.mxu0 0
    %400 = vmatpush1.bf16.msra.mxu0 %v371
    %401 = vmatprep.subr.bf16.mxu0 0
    %402 = vmatpush1.bf16.msra.mxu0 %v370
    %403 = vmatprep.subr.bf16.mxu0 0
    %404 = vmatpush2.bf16.msra.mxu0 0
    %405 = vmatprep.subr.bf16.mxu0 0
    %406 = vmatpush2.bf16.msra.mxu0 0
    %407 = vmatprep.subr.bf16.mxu0 0
    %408 = vmatpush2.bf16.msra.mxu0 0
    %409 = vmatprep.subr.bf16.mxu0 0
    %410 = vmatpush2.bf16.msra.mxu0 0
    %411 = vmatprep.subr.bf16.mxu0 0
    %412 = vmatpush2.bf16.msra.mxu0 0
    %413 = vmatprep.subr.bf16.mxu0 0
    %414 = vmatpush2.bf16.msra.mxu0 0
    %415 = vmatprep.subr.bf16.mxu0 0
    %416 = vmatpush2.bf16.msra.mxu0 0
    %417 = vmatprep.subr.bf16.mxu0 0
    %418 = vmatpush2.bf16.msra.mxu0 0
    %419 = vmatprep.mubr.bf16.mxu0 0
    %420 = vmatmul.mubr.bf16.gmra.mxu0 %v382
    %v421 = vpop.f32.mrf.mxu0
    %v422 = vadd.f32 %v348, %v421
    %v423 = vpop.f32.mrf.mxu0
    %v424 = vpop.f32.mrf.mxu0
    %v425 = vadd.f32 %v348, %v424
    %v426 = vpop.f32.mrf.mxu0
    %427 = vmatprep.mubr.bf16.mxu0 0
    %428 = vmatmul.mubr.bf16.gmra.mxu0 %v385
    %v429 = vpop.f32.mrf.mxu0
    %v430 = vadd.f32 %v348, %v429
    %v431 = vpop.f32.mrf.mxu0
    %v432 = vpop.f32.mrf.mxu0
    %v433 = vpop.f32.mrf.mxu0
    %434 = vdwg.mxu0
    %v435 = vmax.f32 %v422, 0.0
    %v436 = vmax.f32 %v425, 0.0
    %v437 = vmax.f32 %v430, 0.0
    %v439 = vrot.slane %v435, 2
    %440 = vrot.lane.b32.xlu0 %v439, 32
    %v441 = vpop.permute.xlu0 %440
    %v443 = vrot.slane %v435, 4
    %444 = vrot.lane.b32.xlu0 %v443, 64
    %v445 = vpop.permute.xlu0 %444
    %v447 = vrot.slane %v435, 6
    %448 = vrot.lane.b32.xlu0 %v447, 96
    %v449 = vpop.permute.xlu0 %448
    %v452 = vrot.slane %v436, 2
    %453 = vrot.lane.b32.xlu0 %v452, 32
    %v454 = vpop.permute.xlu0 %453
    %v456 = vrot.slane %v436, 4
    %457 = vrot.lane.b32.xlu0 %v456, 64
    %v458 = vpop.permute.xlu0 %457
    %v460 = vrot.slane %v436, 6
    %461 = vrot.lane.b32.xlu0 %v460, 96
    %v462 = vpop.permute.xlu0 %461
    %v465 = vrot.slane %v437, 2
    %466 = vrot.lane.b32.xlu0 %v465, 32
    %v467 = vpop.permute.xlu0 %466
    %v469 = vrot.slane %v437, 4
    %470 = vrot.lane.b32.xlu0 %v469, 64
    %v471 = vpop.permute.xlu0 %470
    %v473 = vsel %vm319, %v435, %v441
    %v474 = vsel %vm327, %v473, %v445
    %vm475 = vcmask 785408
    %v476 = vsel %vm475, %v474, %v449
    %v477 = vsel %vm319, %v436, %v454
    %v478 = vsel %vm327, %v477, %v458
    %v479 = vsel %vm475, %v478, %v462
    %v480 = vsel %vm319, %v437, %v467
    %v481 = vsel %vm327, %v480, %v471
    %v482 = vpack.c.bf16 %v476, %v476
    %v483 = vpack.c.bf16 %v479, %v479
    %v484 = vpack.c.bf16 %v481, %v481
    %v485 = vld [vmem:[%s6] sm:$0xf]
    %v486 = vld [vmem:[%s6 + $0x4] sm:$0xf]
    %v487 = vld [vmem:[%s6 + $0x8] sm:$0xf]
    %v488 = vld [vmem:[%s6 + $0xc] sm:$0xf]
    %v489 = vld [vmem:[%s6 + $0x10] sm:$0xf]
    %v490 = vld [vmem:[%s6 + $0x14] sm:$0xf]
    %v491 = vld [vmem:[%s6 + $0x18] sm:$0xf]
    %v492 = vld [vmem:[%s6 + $0x1c] sm:$0xf]
    %v493 = vld [vmem:[%s6 + $0x20] sm:$0xf]
    %v494 = vld [vmem:[%s6 + $0x24] sm:$0xf]
    %v495 = vld [vmem:[%s6 + $0x28] sm:$0xf]
    %v496 = vld [vmem:[%s6 + $0x2c] sm:$0xf]
    %v497 = vld [vmem:[%s6 + $0x30] sm:$0xf]
    %v498 = vld [vmem:[%s6 + $0x34] sm:$0xf]
    %v499 = vld [vmem:[%s6 + $0x38] sm:$0xf]
    %v500 = vld [vmem:[%s6 + $0x3c] sm:$0xf]
    %v501 = vld [vmem:[%s6 + $0x40] sm:$0xf]
    %v502 = vld [vmem:[%s6 + $0x44] sm:$0xf]
    %v503 = vld [vmem:[%s6 + $0x48] sm:$0xf]
    %v504 = vld [vmem:[%s6 + $0x4c] sm:$0xf]
    %v505 = vld [vmem:[%s6 + $0x50] sm:$0xf]
    %v506 = vld [vmem:[%s6 + $0x54] sm:$0xf]
    %v507 = vld [vmem:[%s6 + $0x58] sm:$0xf]
    %v508 = vld [vmem:[%s6 + $0x5c] sm:$0xf]
    %v509 = vld [vmem:[%s6 + $0x60] sm:$0xf]
    %v510 = vld [vmem:[%s6 + $0x64] sm:$0xf]
    %v511 = vld [vmem:[%s6 + $0x68] sm:$0xf]
    %v512 = vld [vmem:[%s6 + $0x6c] sm:$0xf]
    %v513 = vld [vmem:[%s6 + $0x70] sm:$0xf]
    %v514 = vld [vmem:[%s6 + $0x74] sm:$0xf]
    %v515 = vld [vmem:[%s6 + $0x78] sm:$0xf]
    %v516 = vld [vmem:[%s6 + $0x7c] sm:$0xf]
    %v517 = vld [vmem:[%s6 + $0x80] sm:$0xf]
    %v518 = vld [vmem:[%s6 + $0x84] sm:$0xf]
    %v519 = vld [vmem:[%s6 + $0x88] sm:$0xf]
    %v520 = vld [vmem:[%s6 + $0x8c] sm:$0xf]
    %v521 = vld [vmem:[%s6 + $0x90] sm:$0xf]
    %v522 = vld [vmem:[%s6 + $0x94] sm:$0xf]
    %v523 = vld [vmem:[%s6 + $0x98] sm:$0xf]
    %v524 = vld [vmem:[%s6 + $0x9c] sm:$0xf]
    %v525 = vld [vmem:[%s6 + $0xa0] sm:$0xf]
    %v526 = vld [vmem:[%s6 + $0xa4] sm:$0xf]
    %v527 = vld [vmem:[%s6 + $0xa8] sm:$0xf]
    %v528 = vld [vmem:[%s6 + $0xac] sm:$0xf]
    %v529 = vld [vmem:[%s7] sm:$0x1]
    %v531 = vlaneseq
    %v532 = vshrl.u32 %v531, 7
    %v533 = vsub.s32 0, %v532
    %v534 = vrot.slane %v529, %v533
    %v580 = vunpack.c.l.b16 %v485
    %v581 = vunpack.c.l.b16 %v486
    %v582 = vunpack.c.l.b16 %v487
    %v583 = vunpack.c.l.b16 %v488
    %v584 = vunpack.c.l.b16 %v489
    %v585 = vunpack.c.l.b16 %v490
    %v586 = vunpack.c.l.b16 %v491
    %v587 = vunpack.c.l.b16 %v492
    %v588 = vunpack.c.l.b16 %v493
    %v589 = vunpack.c.l.b16 %v494
    %v590 = vunpack.c.l.b16 %v495
    %v591 = vunpack.c.l.b16 %v496
    %v592 = vunpack.c.l.b16 %v497
    %v593 = vunpack.c.l.b16 %v498
    %v594 = vunpack.c.l.b16 %v499
    %v595 = vunpack.c.l.b16 %v500
    %v596 = vunpack.c.l.b16 %v501
    %v597 = vunpack.c.l.b16 %v502
    %v598 = vunpack.c.l.b16 %v503
    %v599 = vunpack.c.l.b16 %v504
    %v600 = vunpack.c.l.b16 %v505
    %v601 = vunpack.c.l.b16 %v506
    %v602 = vunpack.c.l.b16 %v507
    %v603 = vunpack.c.l.b16 %v508
    %v604 = vunpack.c.l.b16 %v509
    %v605 = vunpack.c.l.b16 %v510
    %v606 = vunpack.c.l.b16 %v511
    %v607 = vunpack.c.l.b16 %v512
    %v608 = vunpack.c.l.b16 %v513
    %v609 = vunpack.c.l.b16 %v514
    %v610 = vunpack.c.l.b16 %v515
    %v611 = vunpack.c.l.b16 %v516
    %v612 = vunpack.c.l.b16 %v517
    %v613 = vunpack.c.l.b16 %v518
    %v614 = vunpack.c.l.b16 %v519
    %v615 = vunpack.c.l.b16 %v520
    %v616 = vunpack.c.l.b16 %v521
    %v617 = vunpack.c.l.b16 %v522
    %v618 = vunpack.c.l.b16 %v523
    %v619 = vunpack.c.l.b16 %v524
    %v620 = vunpack.c.l.b16 %v525
    %v621 = vunpack.c.l.b16 %v526
    %v622 = vunpack.c.l.b16 %v527
    %v623 = vunpack.c.l.b16 %v528
    %v624 = vpack.c.b16 %v581, %v580
    %v625 = vpack.c.b16 %v583, %v582
    %v626 = vpack.c.b16 %v585, %v584
    %v627 = vpack.c.b16 %v587, %v586
    %v628 = vpack.c.b16 %v589, %v588
    %v629 = vpack.c.b16 %v591, %v590
    %v630 = vpack.c.b16 %v593, %v592
    %v631 = vpack.c.b16 %v595, %v594
    %v632 = vpack.c.b16 %v597, %v596
    %v633 = vpack.c.b16 %v599, %v598
    %v634 = vpack.c.b16 %v601, %v600
    %v635 = vpack.c.b16 %v603, %v602
    %v636 = vpack.c.b16 %v605, %v604
    %v637 = vpack.c.b16 %v607, %v606
    %v638 = vpack.c.b16 %v609, %v608
    %v639 = vpack.c.b16 %v611, %v610
    %v640 = vpack.c.b16 %v613, %v612
    %v641 = vpack.c.b16 %v615, %v614
    %v642 = vpack.c.b16 %v617, %v616
    %v643 = vpack.c.b16 %v619, %v618
    %v644 = vpack.c.b16 %v621, %v620
    %v645 = vpack.c.b16 %v623, %v622
    %v669 = vsel %vm475, %v484, 0
    %671 = vmatprep.subr.bf16.mxu0 0
    %672 = vmatpush1.bf16.msra.mxu0 %v631
    %673 = vmatprep.subr.bf16.mxu0 0
    %674 = vmatpush1.bf16.msra.mxu0 %v630
    %675 = vmatprep.subr.bf16.mxu0 0
    %676 = vmatpush1.bf16.msra.mxu0 %v629
    %677 = vmatprep.subr.bf16.mxu0 0
    %678 = vmatpush1.bf16.msra.mxu0 %v628
    %679 = vmatprep.subr.bf16.mxu0 0
    %680 = vmatpush1.bf16.msra.mxu0 %v627
    %681 = vmatprep.subr.bf16.mxu0 0
    %682 = vmatpush1.bf16.msra.mxu0 %v626
    %683 = vmatprep.subr.bf16.mxu0 0
    %684 = vmatpush1.bf16.msra.mxu0 %v625
    %685 = vmatprep.subr.bf16.mxu0 0
    %686 = vmatpush1.bf16.msra.mxu0 %v624
    %687 = vmatprep.subr.bf16.mxu0 0
    %688 = vmatpush2.bf16.msra.mxu0 %v639
    %689 = vmatprep.subr.bf16.mxu0 0
    %690 = vmatpush2.bf16.msra.mxu0 %v638
    %691 = vmatprep.subr.bf16.mxu0 0
    %692 = vmatpush2.bf16.msra.mxu0 %v637
    %693 = vmatprep.subr.bf16.mxu0 0
    %694 = vmatpush2.bf16.msra.mxu0 %v636
    %695 = vmatprep.subr.bf16.mxu0 0
    %696 = vmatpush2.bf16.msra.mxu0 %v635
    %697 = vmatprep.subr.bf16.mxu0 0
    %698 = vmatpush2.bf16.msra.mxu0 %v634
    %699 = vmatprep.subr.bf16.mxu0 0
    %700 = vmatpush2.bf16.msra.mxu0 %v633
    %701 = vmatprep.subr.bf16.mxu0 0
    %702 = vmatpush2.bf16.msra.mxu0 %v632
    %703 = vmatprep.mubr.bf16.mxu0 %v483
    %704 = vmatmul.mubr.bf16.gmra.mxu0 %v482
    %v705 = vpop.f32.mrf.mxu0
    %v706 = vadd.f32 %v534, %v705
    %v707 = vpop.f32.mrf.mxu0
    %v708 = vpop.f32.mrf.mxu0
    %v709 = vpop.f32.mrf.mxu0
    %710 = vdwg.mxu0
    %711 = vmatprep.subr.bf16.mxu0 0
    %712 = vmatpush1.bf16.msra.mxu0 0
    %713 = vmatprep.subr.bf16.mxu0 0
    %714 = vmatpush1.bf16.msra.mxu0 0
    %715 = vmatprep.subr.bf16.mxu0 0
    %716 = vmatpush1.bf16.msra.mxu0 %v645
    %717 = vmatprep.subr.bf16.mxu0 0
    %718 = vmatpush1.bf16.msra.mxu0 %v644
    %719 = vmatprep.subr.bf16.mxu0 0
    %720 = vmatpush1.bf16.msra.mxu0 %v643
    %721 = vmatprep.subr.bf16.mxu0 0
    %722 = vmatpush1.bf16.msra.mxu0 %v642
    %723 = vmatprep.subr.bf16.mxu0 0
    %724 = vmatpush1.bf16.msra.mxu0 %v641
    %725 = vmatprep.subr.bf16.mxu0 0
    %726 = vmatpush1.bf16.msra.mxu0 %v640
    %727 = vmatprep.subr.bf16.mxu0 0
    %728 = vmatpush2.bf16.msra.mxu0 0
    %729 = vmatprep.subr.bf16.mxu0 0
    %730 = vmatpush2.bf16.msra.mxu0 0
    %731 = vmatprep.subr.bf16.mxu0 0
    %732 = vmatpush2.bf16.msra.mxu0 0
    %733 = vmatprep.subr.bf16.mxu0 0
    %734 = vmatpush2.bf16.msra.mxu0 0
    %735 = vmatprep.subr.bf16.mxu0 0
    %736 = vmatpush2.bf16.msra.mxu0 0
    %737 = vmatprep.subr.bf16.mxu0 0
    %738 = vmatpush2.bf16.msra.mxu0 0
    %739 = vmatprep.subr.bf16.mxu0 0
    %740 = vmatpush2.bf16.msra.mxu0 0
    %741 = vmatprep.subr.bf16.mxu0 0
    %742 = vmatpush2.bf16.msra.mxu0 0
    %743 = vmatprep.mubr.bf16.mxu0 0
    %744 = vmatmul.mubr.bf16.gmra.mxu0 %v669
    %v745 = vpop.f32.mrf.mxu0
    %v746 = vadd.f32 %v706, %v745
    %v747 = vpop.f32.mrf.mxu0
    %v748 = vpop.f32.mrf.mxu0
    %v749 = vpop.f32.mrf.mxu0
    %750 = vdwg.mxu0
    %v751 = vmax.f32 %v746, 0.0
    %v752 = vpack.c.bf16 %v751, %v751
    %v753 = vld [vmem:[%s8] sm:$0xf]
    %v754 = vld [vmem:[%s8 + $0x4] sm:$0xf]
    %v755 = vld [vmem:[%s8 + $0x8] sm:$0xf]
    %v756 = vld [vmem:[%s8 + $0xc] sm:$0xf]
    %v757 = vld [vmem:[%s8 + $0x10] sm:$0xf]
    %v758 = vld [vmem:[%s8 + $0x14] sm:$0xf]
    %v759 = vld [vmem:[%s8 + $0x18] sm:$0xf]
    %v760 = vld [vmem:[%s8 + $0x1c] sm:$0xf]
    %v761 = vld [vmem:[%s8 + $0x20] sm:$0xf]
    %v762 = vld [vmem:[%s8 + $0x24] sm:$0xf]
    %v763 = vld [vmem:[%s8 + $0x28] sm:$0xf]
    %v764 = vld [vmem:[%s8 + $0x2c] sm:$0xf]
    %v765 = vld [vmem:[%s8 + $0x30] sm:$0xf]
    %v766 = vld [vmem:[%s8 + $0x34] sm:$0xf]
    %v767 = vld [vmem:[%s8 + $0x38] sm:$0xf]
    %v768 = vld [vmem:[%s8 + $0x3c] sm:$0xf]
    %v769 = vld [vmem:[%s9] sm:$0x1]
    %v771 = vlaneseq
    %v772 = vshrl.u32 %v771, 7
    %v773 = vsub.s32 0, %v772
    %v774 = vrot.slane %v769, %v773
    %v792 = vunpack.c.l.b16 %v753
    %v793 = vunpack.c.l.b16 %v754
    %v794 = vunpack.c.l.b16 %v755
    %v795 = vunpack.c.l.b16 %v756
    %v796 = vunpack.c.l.b16 %v757
    %v797 = vunpack.c.l.b16 %v758
    %v798 = vunpack.c.l.b16 %v759
    %v799 = vunpack.c.l.b16 %v760
    %v800 = vunpack.c.l.b16 %v761
    %v801 = vunpack.c.l.b16 %v762
    %v802 = vunpack.c.l.b16 %v763
    %v803 = vunpack.c.l.b16 %v764
    %v804 = vunpack.c.l.b16 %v765
    %v805 = vunpack.c.l.b16 %v766
    %v806 = vunpack.c.l.b16 %v767
    %v807 = vunpack.c.l.b16 %v768
    %v808 = vpack.c.b16 %v793, %v792
    %v809 = vpack.c.b16 %v795, %v794
    %v810 = vpack.c.b16 %v797, %v796
    %v811 = vpack.c.b16 %v799, %v798
    %v812 = vpack.c.b16 %v801, %v800
    %v813 = vpack.c.b16 %v803, %v802
    %v814 = vpack.c.b16 %v805, %v804
    %v815 = vpack.c.b16 %v807, %v806
    %824 = vmatprep.subr.bf16.mxu0 0
    %825 = vmatpush1.bf16.msra.mxu0 %v815
    %826 = vmatprep.subr.bf16.mxu0 0
    %827 = vmatpush1.bf16.msra.mxu0 %v814
    %828 = vmatprep.subr.bf16.mxu0 0
    %829 = vmatpush1.bf16.msra.mxu0 %v813
    %830 = vmatprep.subr.bf16.mxu0 0
    %831 = vmatpush1.bf16.msra.mxu0 %v812
    %832 = vmatprep.subr.bf16.mxu0 0
    %833 = vmatpush1.bf16.msra.mxu0 %v811
    %834 = vmatprep.subr.bf16.mxu0 0
    %835 = vmatpush1.bf16.msra.mxu0 %v810
    %836 = vmatprep.subr.bf16.mxu0 0
    %837 = vmatpush1.bf16.msra.mxu0 %v809
    %838 = vmatprep.subr.bf16.mxu0 0
    %839 = vmatpush1.bf16.msra.mxu0 %v808
    %840 = vmatprep.subr.bf16.mxu0 0
    %841 = vmatpush2.bf16.msra.mxu0 0
    %842 = vmatprep.subr.bf16.mxu0 0
    %843 = vmatpush2.bf16.msra.mxu0 0
    %844 = vmatprep.subr.bf16.mxu0 0
    %845 = vmatpush2.bf16.msra.mxu0 0
    %846 = vmatprep.subr.bf16.mxu0 0
    %847 = vmatpush2.bf16.msra.mxu0 0
    %848 = vmatprep.subr.bf16.mxu0 0
    %849 = vmatpush2.bf16.msra.mxu0 0
    %850 = vmatprep.subr.bf16.mxu0 0
    %851 = vmatpush2.bf16.msra.mxu0 0
    %852 = vmatprep.subr.bf16.mxu0 0
    %853 = vmatpush2.bf16.msra.mxu0 0
    %854 = vmatprep.subr.bf16.mxu0 0
    %855 = vmatpush2.bf16.msra.mxu0 0
    %856 = vmatprep.mubr.bf16.mxu0 0
    %857 = vmatmul.mubr.bf16.gmra.mxu0 %v752
    %v858 = vpop.f32.mrf.mxu0
    %v859 = vadd.f32 %v774, %v858
    %v860 = vpop.f32.mrf.mxu0
    %v861 = vpop.f32.mrf.mxu0
    %v862 = vpop.f32.mrf.mxu0
    %863 = vdwg.mxu0
    %v864 = vsel %vm289, %v859, -inf
    %865 = vmax.xlane.f32.xlu0 %v864
    %v866 = vpop.xlane.xlu0 %865
    %v867 = vsub.f32 %v859, %v866
    %v868 = vmul.f32 %v867, 1.442695
    %v869 = vpow.pop %v868
    %v870 = vsel %vm289, %v869, 0.0
    %871 = vadd.xlane.f32.xlu0 %v870
    %v872 = vpop.xlane.xlu0 %871
    %v873 = vlog2.pop %v872
    %v874 = vmul.f32 %v873, 0.6931472
    %875 = vst [vmem:[#allocation2] sm:$0x3] %v751
    %v876 = vsub.f32 %v867, %v874
    %877 = vst [vmem:[#allocation4] sm:$0x3] %v876
    // Predicated region
    $region42: #{gnn_stack_forward.3} parent=1 // pred_check
      _
    $region43: #{gnn_stack_forward.3} parent=1 // pred_check_branch
      %879 = sbr.rel (0) target = $region45
    $region44: #{gnn_stack_forward.3} parent=1 // pred_region
      %s881 = ssub.s32 32, 32
      %882 = vsyncadd [#allocation3], %s881
      %s884 = sshll.u32 [#allocation2], 4
      %s885 = int_to_ptr.vmem [resolvable:$true] %s884
      %887 = dma.vmem_to_hbm [thread:$0]  %s885, 32, %s10, [#allocation3]
    $region45: #{gnn_stack_forward.3} parent=1 // pred_fallthru
      _
    // Predicated region
    $region46: #{gnn_stack_forward.3} parent=1 // pred_check
      _
    $region47: #{gnn_stack_forward.3} parent=1 // pred_check_branch
      %889 = sbr.rel (0) target = $region49
    $region48: #{gnn_stack_forward.3} parent=1 // pred_region
      %s891 = ssub.s32 32, 32
      %892 = vsyncadd [#allocation5], %s891
      %s894 = sshll.u32 [#allocation4], 4
      %s895 = int_to_ptr.vmem [resolvable:$true] %s894
      %897 = dma.vmem_to_hbm [thread:$0]  %s895, 32, %s11, [#allocation5]
    $region49: #{gnn_stack_forward.3} parent=1 // pred_fallthru
      _
    // Predicated region
    $region50: #{gnn_stack_forward.3} parent=1 // pred_check
      _
    $region51: #{gnn_stack_forward.3} parent=1 // pred_check_branch
      %899 = sbr.rel (0) target = $region53
    $region52: #{gnn_stack_forward.3} parent=1 // pred_region
      %900 = dma.done [#allocation3], 32
    $region53: #{gnn_stack_forward.3} parent=1 // pred_fallthru
      _
    // Predicated region
    $region54: #{gnn_stack_forward.3} parent=1 // pred_check
      _
    $region55: #{gnn_stack_forward.3} parent=1 // pred_check_branch
      %902 = sbr.rel (0) target = $region57
    $region56: #{gnn_stack_forward.3} parent=1 // pred_region
      %903 = dma.done [#allocation5], 32
    $region57: #{gnn_stack_forward.3} parent=1 // pred_fallthru
      _
    %904 = vsyncpa [#allocation3], 1
    %905 = vsyncpa [#allocation5], 1

</llo_original>
